<compile_context>
chip_gen: v7x
topology: tpu7x:2x2x1
jax: 0.10.0
libtpu: 0.0.40
codegen_flags: <defaults>
</compile_context>

<pallas_src>
import functools

import jax
import jax.numpy as jnp
from jax.experimental import pallas as pl
from jax.experimental.pallas import tpu as pltpu

EPS = 1e-6

_TILE_VMEM_BUDGET = 32 * 1024 * 1024   # bytes assumed available when sizing the row tile
_VMEM_LIMIT_BYTES = 40 * 1024 * 1024   # scoped VMEM cap passed to Mosaic (safe on all gens)


def _round_up(n, m):
    return ((n + m - 1) // m) * m


def _sublayer_connection_kernel(x_ref, a2_ref, b2_ref, w_ref, wb_ref, o_ref,
                                *, matmul_dtype):
    x_in = x_ref[...]                                     # (TM, D), source dtype
    xf = x_in.astype(jnp.float32)
    d = xf.shape[-1]

    # --- LayerNorm (torch semantics: unbiased std, eps added to the std) ---
    # One-pass moments: both cross-lane (XLU) reductions issue back-to-back.
    s1 = jnp.sum(xf, axis=-1, keepdims=True)
    s2 = jnp.sum(xf * xf, axis=-1, keepdims=True)
    mean = s1 * (1.0 / d)
    var = (s2 - s1 * mean) * (1.0 / (d - 1))              # unbiased variance
    var = jnp.maximum(var, 0.0)                            # guard tiny negatives
    std = jnp.sqrt(var)
    inv = pl.reciprocal(std + EPS, approx=False)            # (TM, 1) -> EUP slot
    a2 = a2_ref[...].astype(jnp.float32)
    b2 = b2_ref[...].astype(jnp.float32)
    normed = (xf - mean) * (a2 * inv) + b2                   # (TM, D)

    # --- sublayer: Linear(size, size) on the MXU, f32 accumulation ---
    y = jnp.dot(normed.astype(matmul_dtype), w_ref[...].astype(matmul_dtype),
                preferred_element_type=jnp.float32)
    y = y + wb_ref[...].astype(jnp.float32)

    # --- dropout (eval mode -> identity) + residual (reuses loaded tile) ---
    o_ref[...] = (xf + y).astype(o_ref.dtype)


def _choose_tile_rows(rows, d, x_itemsize, w_itemsize,
                      vmem_budget=_TILE_VMEM_BUDGET):
    """Largest row tile that fits the VMEM budget, keeping >= 2 grid steps."""
    if rows <= 8:
        return rows                                        # one full-extent block
    # Grid-invariant operands (W, a_2, b_2, bias), double-buffered by default.
    invariant = 2 * (d * d * w_itemsize + 3 * d * 4)
    # Per-row cost: x and out blocks double-buffered + f32 temporaries headroom.
    per_row = 4 * d * x_itemsize + 4 * d * 4
    tm = max((vmem_budget - invariant) // per_row, 8)
    tm = min(tm, 8192)                                      # diminishing returns past a few MiB
    # Keep >= 2 grid steps so both v7x TensorCores get work ("parallel" axis).
    tm = min(tm, _round_up(pl.cdiv(rows, 2), 8))
    if tm >= rows:
        return rows
    return max((tm // 8) * 8, 8)                            # sublane (8) alignment


def sublayer_connection(x, a2, b2, w, wb, *, tile_rows=None, matmul_dtype=None):
    """x: (B, S, D). Returns x + Linear(LayerNorm(x)) (torch-exact LN, eval dropout)."""
    B, S, D = x.shape
    rows = B * S

    if matmul_dtype is None:
        # f32 inputs -> f32 MXU operands (faithful to the reference at 1e-4);
        # bf16 inputs (or explicit override on v6e/v7x at large D) -> bf16 MXU.
        matmul_dtype = jnp.bfloat16 if x.dtype == jnp.bfloat16 else jnp.float32

    x2 = x.reshape(rows, D)            # no pad / no extra copy: ragged tail is masked
    a2_2d = a2.reshape(1, D)
    b2_2d = b2.reshape(1, D)
    wb_2d = wb.reshape(1, D)
    w_mm = w.astype(matmul_dtype)      # bf16 halves W's HBM/VMEM traffic when enabled

    if tile_rows is None:
        tm = _choose_tile_rows(rows, D, x2.dtype.itemsize, w_mm.dtype.itemsize)
    else:
        tm = min(int(tile_rows), rows)
        if tm < rows:
            tm = max((tm // 8) * 8, 8)

    grid = (pl.cdiv(rows, tm),)

    kernel = functools.partial(_sublayer_connection_kernel,
                               matmul_dtype=matmul_dtype)

    out2 = pl.pallas_call(
        kernel,
        out_shape=jax.ShapeDtypeStruct((rows, D), x.dtype),
        grid_spec=pltpu.PrefetchScalarGridSpec(
            num_scalar_prefetch=0,
            grid=grid,
            in_specs=[
                pl.BlockSpec((tm, D), lambda i: (i, 0)),      # x rows
                pl.BlockSpec((1, D), lambda i: (0, 0)),       # a_2
                pl.BlockSpec((1, D), lambda i: (0, 0)),       # b_2
                pl.BlockSpec((D, D), lambda i: (0, 0)),       # linear W (resident)
                pl.BlockSpec((1, D), lambda i: (0, 0)),       # linear bias
            ],
            out_specs=pl.BlockSpec((tm, D), lambda i: (i, 0)),
        ),
        compiler_params=pltpu.CompilerParams(
            dimension_semantics=("parallel",),
            vmem_limit_bytes=_VMEM_LIMIT_BYTES,
        ),
    )(x2, a2_2d, b2_2d, w_mm, wb_2d)

    return out2.reshape(B, S, D)


def _reference(x, a2, b2, w, wb):
    """Pure-JAX reference reproducing the torch forward exactly (eval mode)."""
    xf = x.astype(jnp.float32)
    d = xf.shape[-1]
    mean = jnp.mean(xf, axis=-1, keepdims=True)
    xc = xf - mean
    std = jnp.sqrt(jnp.sum(xc * xc, axis=-1, keepdims=True) / (d - 1))
    normed = a2 * xc / (std + EPS) + b2
    y = normed @ w + wb
    return (xf + y).astype(x.dtype)


if __name__ == "__main__":
    # rows = B*S = 600 -> two 304-row tiles; the second tile is ragged (8 rows
    # masked), exercising the no-pad path, and >=2 grid steps feed both v7x TCs.
    B, S, D = 3, 200, 128
    key = jax.random.PRNGKey(0)
    kx, kw, kb, ka, kbb = jax.random.split(key, 5)

    x = jax.random.normal(kx, (B, S, D), dtype=jnp.float32)

    # LayerNorm params (perturbed from the ones/zeros init to exercise affine).
    a2 = 1.0 + 0.1 * jax.random.normal(ka, (D,), dtype=jnp.float32)
    b2 = 0.1 * jax.random.normal(kbb, (D,), dtype=jnp.float32)

    # Deterministic synthetic Linear(size, size) sublayer weights.
    w = jax.random.normal(kw, (D, D), dtype=jnp.float32) * (1.0 / jnp.sqrt(D))
    wb = jax.random.normal(kb, (D,), dtype=jnp.float32) * 0.01

    out = sublayer_connection(x, a2, b2, w, wb)
    out = jax.block_until_ready(out)

    ref = _reference(x, a2, b2, w, wb)
    assert out.shape == (B, S, D)
    err = float(jnp.max(jnp.abs(out - ref)))
    assert err < 1e-4, f"max abs err {err}"

    print("KERNEL_OK")
</pallas_src>

<mosaic_0001>
module attributes {stable_mosaic.version = 11 : i64} {
  func.func @_sublayer_connection_kernel(%arg0: i32, %arg1: memref<304x128xf32, #tpu.memory_space<vmem>>, %arg2: memref<1x128xf32, #tpu.memory_space<vmem>>, %arg3: memref<1x128xf32, #tpu.memory_space<vmem>>, %arg4: memref<128x128xf32, #tpu.memory_space<vmem>>, %arg5: memref<1x128xf32, #tpu.memory_space<vmem>>, %arg6: memref<304x128xf32, #tpu.memory_space<vmem>>) attributes {dimension_semantics = [#tpu.dimension_semantics<parallel>], iteration_bounds = array<i64: 2>, scalar_prefetch = 0 : i64, scratch_operands = 0 : i64, tpu.core_type = #tpu.core_type<tc>, window_params = [{transform_indices = @transform_0, window_bounds = array<i64: 304, 128>}, {pipeline_mode = #tpu.pipeline_mode<synchronous>, transform_indices = @transform_1, window_bounds = array<i64: 1, 128>}, {pipeline_mode = #tpu.pipeline_mode<synchronous>, transform_indices = @transform_2, window_bounds = array<i64: 1, 128>}, {pipeline_mode = #tpu.pipeline_mode<synchronous>, transform_indices = @transform_3, window_bounds = array<i64: 128, 128>}, {pipeline_mode = #tpu.pipeline_mode<synchronous>, transform_indices = @transform_4, window_bounds = array<i64: 1, 128>}, {transform_indices = @transform_5, window_bounds = array<i64: 304, 128>}]} {
    %c0 = arith.constant 0 : index
    %c0_0 = arith.constant 0 : index
    %0 = vector.load %arg1[%c0, %c0_0] : memref<304x128xf32, #tpu.memory_space<vmem>>, vector<304x128xf32>
    %cst = arith.constant dense<0.000000e+00> : vector<304xf32>
    %1 = vector.multi_reduction <add>, %0, %cst [1] : vector<304x128xf32> to vector<304xf32>
    %2 = vector.shape_cast %1 : vector<304xf32> to vector<304x1xf32>
    %3 = arith.mulf %0, %0 : vector<304x128xf32>
    %cst_1 = arith.constant dense<0.000000e+00> : vector<304xf32>
    %4 = vector.multi_reduction <add>, %3, %cst_1 [1] : vector<304x128xf32> to vector<304xf32>
    %5 = vector.shape_cast %4 : vector<304xf32> to vector<304x1xf32>
    %cst_2 = arith.constant 7.812500e-03 : f32
    %6 = vector.broadcast %cst_2 : f32 to vector<304x1xf32>
    %7 = arith.mulf %2, %6 : vector<304x1xf32>
    %8 = arith.mulf %2, %7 : vector<304x1xf32>
    %9 = arith.subf %5, %8 : vector<304x1xf32>
    %cst_3 = arith.constant 0.00787401571 : f32
    %10 = vector.broadcast %cst_3 : f32 to vector<304x1xf32>
    %11 = arith.mulf %9, %10 : vector<304x1xf32>
    %cst_4 = arith.constant 0.000000e+00 : f32
    %12 = vector.broadcast %cst_4 : f32 to vector<304x1xf32>
    %13 = arith.maximumf %11, %12 : vector<304x1xf32>
    %14 = math.sqrt %13 : vector<304x1xf32>
    %cst_5 = arith.constant 9.99999997E-7 : f32
    %15 = vector.broadcast %cst_5 : f32 to vector<304x1xf32>
    %16 = arith.addf %14, %15 : vector<304x1xf32>
    %17 = tpu.reciprocal %16 : vector<304x1xf32> -> vector<304x1xf32>
    %c0_6 = arith.constant 0 : index
    %c0_7 = arith.constant 0 : index
    %18 = vector.load %arg2[%c0_6, %c0_7] : memref<1x128xf32, #tpu.memory_space<vmem>>, vector<1x128xf32>
    %c0_8 = arith.constant 0 : index
    %c0_9 = arith.constant 0 : index
    %19 = vector.load %arg3[%c0_8, %c0_9] : memref<1x128xf32, #tpu.memory_space<vmem>>, vector<1x128xf32>
    %20 = vector.broadcast %7 : vector<304x1xf32> to vector<304x128xf32>
    %21 = arith.subf %0, %20 : vector<304x128xf32>
    %22 = vector.broadcast %18 : vector<1x128xf32> to vector<304x128xf32>
    %23 = vector.broadcast %17 : vector<304x1xf32> to vector<304x128xf32>
    %24 = arith.mulf %22, %23 : vector<304x128xf32>
    %25 = arith.mulf %21, %24 : vector<304x128xf32>
    %26 = vector.broadcast %19 : vector<1x128xf32> to vector<304x128xf32>
    %27 = arith.addf %25, %26 : vector<304x128xf32>
    %c0_10 = arith.constant 0 : index
    %c0_11 = arith.constant 0 : index
    %28 = vector.load %arg4[%c0_10, %c0_11] : memref<128x128xf32, #tpu.memory_space<vmem>>, vector<128x128xf32>
    %cst_12 = arith.constant dense<0.000000e+00> : vector<304x128xf32>
    %29 = tpu.matmul %27, %28, %cst_12 {dimension_numbers = #tpu.dot_dimension_numbers<[1], [0], [0], [1], [0, 0, 1, 1], [], []>} : vector<304x128xf32>, vector<128x128xf32>, vector<304x128xf32> -> vector<304x128xf32>
    %c0_13 = arith.constant 0 : index
    %c0_14 = arith.constant 0 : index
    %30 = vector.load %arg5[%c0_13, %c0_14] : memref<1x128xf32, #tpu.memory_space<vmem>>, vector<1x128xf32>
    %31 = vector.broadcast %30 : vector<1x128xf32> to vector<304x128xf32>
    %32 = arith.addf %29, %31 : vector<304x128xf32>
    %33 = arith.addf %0, %32 : vector<304x128xf32>
    %c0_15 = arith.constant 0 : index
    %c0_16 = arith.constant 0 : index
    %34 = vector.load %arg6[%c0_15, %c0_16] : memref<304x128xf32, #tpu.memory_space<vmem>>, vector<304x128xf32>
    tpu.vector_store %arg6[%c0_15, %c0_16], %33 {strides = array<i32>} : memref<304x128xf32, #tpu.memory_space<vmem>>, vector<304x128xf32>,
    return
  }
  func.func @transform_0(%arg0: i32) -> (i32, i32) {
    %c0_i32 = arith.constant 0 : i32
    %c0_i32_0 = arith.constant 0 : i32
    return %arg0, %c0_i32 : i32, i32
  }
  func.func @transform_1(%arg0: i32) -> (i32, i32) {
    %c0_i32 = arith.constant 0 : i32
    %c0_i32_0 = arith.constant 0 : i32
    %c0_i32_1 = arith.constant 0 : i32
    return %c0_i32, %c0_i32_0 : i32, i32
  }
  func.func @transform_2(%arg0: i32) -> (i32, i32) {
    %c0_i32 = arith.constant 0 : i32
    %c0_i32_0 = arith.constant 0 : i32
    %c0_i32_1 = arith.constant 0 : i32
    return %c0_i32, %c0_i32_0 : i32, i32
  }
  func.func @transform_3(%arg0: i32) -> (i32, i32) {
    %c0_i32 = arith.constant 0 : i32
    %c0_i32_0 = arith.constant 0 : i32
    %c0_i32_1 = arith.constant 0 : i32
    return %c0_i32, %c0_i32_0 : i32, i32
  }
  func.func @transform_4(%arg0: i32) -> (i32, i32) {
    %c0_i32 = arith.constant 0 : i32
    %c0_i32_0 = arith.constant 0 : i32
    %c0_i32_1 = arith.constant 0 : i32
    return %c0_i32, %c0_i32_0 : i32, i32
  }
  func.func @transform_5(%arg0: i32) -> (i32, i32) {
    %c0_i32 = arith.constant 0 : i32
    %c0_i32_0 = arith.constant 0 : i32
    return %arg0, %c0_i32 : i32, i32
  }
}

</mosaic_0001>

<llo_original>
// kernel: tpu_custom_call.1
$region0: #{tpu_custom_call.1}
  #allocation0 [shape = 'u32[]', space=smem, size = 0x4, offset = 0x4, fixed_abs, tag = 'smem constant byte address 0x4 - core index']
  #allocation1 [shape = 'u32[144,128]{1,0:T(1,128)}', space=vmem, size = 0x12000, scoped, tag = 'internal scratch']
  %s0 = inlined_call_operand.hbm [shape: f32[600,128], index: 0, kind: input, shape index: {}]
  %s1 = inlined_call_operand.vmem [shape: f32[1,128], index: 1, kind: input, shape index: {}]
  %s2 = inlined_call_operand.vmem [shape: f32[1,128], index: 2, kind: input, shape index: {}]
  %s3 = inlined_call_operand.hbm [shape: f32[128,128], index: 3, kind: input, shape index: {}]
  %s4 = inlined_call_operand.vmem [shape: f32[1,128], index: 4, kind: input, shape index: {}]
  %s5 = inlined_call_operand.hbm [shape: f32[600,128], index: 5, kind: output, shape index: {}]
  %s6 = sld [smem:[#allocation0]]
  $region61: #{tpu_custom_call.1} parent=0
    _
  %s8 = ssub.s32 1, %s6
  %s9 = scalar_select 0, %s8, %s6
  $region1: #{tpu_custom_call.1} parent=0
    #allocation2 [shape = 'u8[311296]{0}', space=vmem, size = 0x4c000, scoped, tag = 'input window, operand 0']
    #allocation3 [shape = 's32[2]{0}', space=sflag, size = 0x8, scoped, tag = 'scoped memory for tpu_custom_call.1']
    #allocation4 [shape = 's32[2]{0}', space=sflag, size = 0x8, scoped, tag = 'scoped memory for tpu_custom_call.1']
    #allocation5 [shape = 'u8[65536]{0}', space=vmem, size = 0x10000, scoped, tag = 'input window, operand 3, single buffered']
    #allocation6 [shape = 's32[1]{0}', space=sflag, size = 0x4, scoped, tag = 'scoped memory for tpu_custom_call.1']
    #allocation7 [shape = 'u8[311296]{0}', space=vmem, size = 0x4c000, scoped, tag = 'output window, operand 0']
    %10 = vsyncpa [#allocation3], 0
    %s11 = scalar_lea.sflag [#allocation3], 1
    %12 = vsyncpa %s11, 0
    %13 = vsyncpa [#allocation6], 0
    %14 = vsyncpa [#allocation4], 0
    %s15 = scalar_lea.sflag [#allocation4], 1
    %16 = vsyncpa %s15, 0
    loop: start=0, step=1, limit=4
    $region2: #{tpu_custom_call.1} parent=1 // loop_pre_header
      _
    $region3: #{tpu_custom_call.1} parent=1 // loop_header
      %s18 = sphi 0, %s22
      %p19 = scmp.ge.s32.totalorder %s18, 4
      %s28 = sphi 0, %s30
      %s31 = sphi 0, %s28
      %s32 = sphi 0, %s31
      %s48 = sphi 0, %s32
      %s52 = sphi 0, %s52
      %s54 = sphi 0, %s52
      %s55 = sphi 0, %s54
      %s69 = sphi 0, %s55
      %s73 = sphi 0, %s73
      %s75 = sphi 0, %s73
      %s76 = sphi 0, %s75
      %s90 = sphi 0, %s76
      %s94 = sphi 0, %s94
      %s96 = sphi 0, %s94
      %s97 = sphi 0, %s96
      %s111 = sphi 0, %s97
      %s115 = sphi 0, %s115
      %s117 = sphi 0, %s115
      %s118 = sphi 0, %s117
      %s132 = sphi 0, %s118
      %s138 = sphi 0, %s140
      %s141 = sphi 0, %s138
      %s142 = sphi 0, %s141
      %s158 = sphi 0, %s142
    $region4: #{tpu_custom_call.1} parent=1 // loop_header_branch
      %21 = sbr.rel (%p19) target = $region8
    $region5: #{tpu_custom_call.1} parent=1 // loop_body
      %s23 = ssub.s32 %s18, 1
      %s24 = ssub.s32 %s18, 2
      %s25 = sadd.s32 %s18, 1
      %s26 = ssub.s32 %s18, %s25
      %p27 = scmp.eq.s32.totalorder %s26, 0
      %s29 = sadd.s32 %s28, 1
      %s30 = scalar_select %p27, %s28, %s29
      %p33 = pneg %p27
      %p34 = scmp.eq.s32.totalorder %s18, 1
      %p35 = por %p33, %p34
      %p36 = scmp.ne.s32.totalorder %s28, %s31
      %p37 = scmp.eq.s32.totalorder %s18, 0
      %p38 = por %p36, %p37
      %p39 = scmp.ne.s32.totalorder %s28, %s31
      %p40 = scmp.eq.s32.totalorder %s23, 1
      %p41 = por %p39, %p40
      %p42 = scmp.ne.s32.totalorder %s31, %s32
      %p43 = scmp.eq.s32.totalorder %s23, 0
      %p44 = por %p42, %p43
      %p45 = scmp.ne.s32.totalorder %s31, %s32
      %p46 = scmp.eq.s32.totalorder %s24, 1
      %p47 = por %p45, %p46
      %p49 = scmp.ne.s32.totalorder %s32, %s48
      %p50 = scmp.eq.s32.totalorder %s24, 0
      %p51 = por %p49, %p50
      %s53 = sadd.s32 %s52, 1
      %p56 = scmp.eq.s32.totalorder %s18, 1
      %p57 = scmp.ne.s32.totalorder %s52, %s54
      %p58 = scmp.eq.s32.totalorder %s18, 0
      %p59 = por %p57, %p58
      %p60 = scmp.ne.s32.totalorder %s52, %s54
      %p61 = scmp.eq.s32.totalorder %s23, 1
      %p62 = por %p60, %p61
      %p63 = scmp.ne.s32.totalorder %s54, %s55
      %p64 = scmp.eq.s32.totalorder %s23, 0
      %p65 = por %p63, %p64
      %p66 = scmp.ne.s32.totalorder %s54, %s55
      %p67 = scmp.eq.s32.totalorder %s24, 1
      %p68 = por %p66, %p67
      %p70 = scmp.ne.s32.totalorder %s55, %s69
      %p71 = scmp.eq.s32.totalorder %s24, 0
      %p72 = por %p70, %p71
      %s74 = sadd.s32 %s73, 1
      %p77 = scmp.eq.s32.totalorder %s18, 1
      %p78 = scmp.ne.s32.totalorder %s73, %s75
      %p79 = scmp.eq.s32.totalorder %s18, 0
      %p80 = por %p78, %p79
      %p81 = scmp.ne.s32.totalorder %s73, %s75
      %p82 = scmp.eq.s32.totalorder %s23, 1
      %p83 = por %p81, %p82
      %p84 = scmp.ne.s32.totalorder %s75, %s76
      %p85 = scmp.eq.s32.totalorder %s23, 0
      %p86 = por %p84, %p85
      %p87 = scmp.ne.s32.totalorder %s75, %s76
      %p88 = scmp.eq.s32.totalorder %s24, 1
      %p89 = por %p87, %p88
      %p91 = scmp.ne.s32.totalorder %s76, %s90
      %p92 = scmp.eq.s32.totalorder %s24, 0
      %p93 = por %p91, %p92
      %s95 = sadd.s32 %s94, 1
      %p98 = scmp.eq.s32.totalorder %s18, 1
      %p99 = scmp.ne.s32.totalorder %s94, %s96
      %p100 = scmp.eq.s32.totalorder %s18, 0
      %p101 = por %p99, %p100
      %p102 = scmp.ne.s32.totalorder %s94, %s96
      %p103 = scmp.eq.s32.totalorder %s23, 1
      %p104 = por %p102, %p103
      %p105 = scmp.ne.s32.totalorder %s96, %s97
      %p106 = scmp.eq.s32.totalorder %s23, 0
      %p107 = por %p105, %p106
      %p108 = scmp.ne.s32.totalorder %s96, %s97
      %p109 = scmp.eq.s32.totalorder %s24, 1
      %p110 = por %p108, %p109
      %p112 = scmp.ne.s32.totalorder %s97, %s111
      %p113 = scmp.eq.s32.totalorder %s24, 0
      %p114 = por %p112, %p113
      %s116 = sadd.s32 %s115, 1
      %p119 = scmp.eq.s32.totalorder %s18, 1
      %p120 = scmp.ne.s32.totalorder %s115, %s117
      %p121 = scmp.eq.s32.totalorder %s18, 0
      %p122 = por %p120, %p121
      %p123 = scmp.ne.s32.totalorder %s115, %s117
      %p124 = scmp.eq.s32.totalorder %s23, 1
      %p125 = por %p123, %p124
      %p126 = scmp.ne.s32.totalorder %s117, %s118
      %p127 = scmp.eq.s32.totalorder %s23, 0
      %p128 = por %p126, %p127
      %p129 = scmp.ne.s32.totalorder %s117, %s118
      %p130 = scmp.eq.s32.totalorder %s24, 1
      %p131 = por %p129, %p130
      %p133 = scmp.ne.s32.totalorder %s118, %s132
      %p134 = scmp.eq.s32.totalorder %s24, 0
      %p135 = por %p133, %p134
      %s136 = ssub.s32 %s18, %s25
      %p137 = scmp.eq.s32.totalorder %s136, 0
      %s139 = sadd.s32 %s138, 1
      %s140 = scalar_select %p137, %s138, %s139
      %p143 = pneg %p137
      %p144 = scmp.eq.s32.totalorder %s18, 1
      %p145 = por %p143, %p144
      %p146 = scmp.ne.s32.totalorder %s138, %s141
      %p147 = scmp.eq.s32.totalorder %s18, 0
      %p148 = por %p146, %p147
      %p149 = scmp.ne.s32.totalorder %s138, %s141
      %p150 = scmp.eq.s32.totalorder %s23, 1
      %p151 = por %p149, %p150
      %p152 = scmp.ne.s32.totalorder %s141, %s142
      %p153 = scmp.eq.s32.totalorder %s23, 0
      %p154 = por %p152, %p153
      %p155 = scmp.ne.s32.totalorder %s141, %s142
      %p156 = scmp.eq.s32.totalorder %s24, 1
      %p157 = por %p155, %p156
      %p159 = scmp.ne.s32.totalorder %s142, %s158
      %p160 = scmp.eq.s32.totalorder %s24, 0
      %p161 = por %p159, %p160
      %p162 = scmp.le.s32.totalorder 1, %s18
      %p163 = scmp.lt.s32.totalorder %s18, 3
      %p164 = pnand %p162, %p163
      %p165 = pneg %p164
      // Predicated region
      $region9: #{tpu_custom_call.1} parent=5 // pred_check
        _
      $region10: #{tpu_custom_call.1} parent=5 // pred_check_branch
        %167 = sbr.rel (%p164) target = $region12
      $region11: #{tpu_custom_call.1} parent=5 // pred_region
        %s168 = ssub.s32 %s18, 1
        // Predicated region
        $region13: #{tpu_custom_call.1} parent=11 // pred_check
          %p169 = pneg %p65
        $region14: #{tpu_custom_call.1} parent=11 // pred_check_branch
          %171 = sbr.rel (%p169) target = $region16
        $region15: #{tpu_custom_call.1} parent=11 // pred_region
          _
        $region16: #{tpu_custom_call.1} parent=11 // pred_fallthru
          _
        // Predicated region
        $region17: #{tpu_custom_call.1} parent=11 // pred_check
          %p172 = pneg %p86
        $region18: #{tpu_custom_call.1} parent=11 // pred_check_branch
          %174 = sbr.rel (%p172) target = $region20
        $region19: #{tpu_custom_call.1} parent=11 // pred_region
          _
        $region20: #{tpu_custom_call.1} parent=11 // pred_fallthru
          _
        // Predicated region
        $region21: #{tpu_custom_call.1} parent=11 // pred_check
          %p175 = pneg %p107
        $region22: #{tpu_custom_call.1} parent=11 // pred_check_branch
          %177 = sbr.rel (%p175) target = $region24
        $region23: #{tpu_custom_call.1} parent=11 // pred_region
          %s179 = ssub.s32 2048, 2048
          %180 = vsyncadd [#allocation6], %s179
          %s181 = sshll.u32 [#allocation5], 4
          %s182 = int_to_ptr.vmem [resolvable:$true] %s181
          %187 = dma.hbm_to_vmem [thread:$0]  %s3, 2048, %s182, [#allocation6], 128, 128, 8
        $region24: #{tpu_custom_call.1} parent=11 // pred_fallthru
          _
        // Predicated region
        $region25: #{tpu_custom_call.1} parent=11 // pred_check
          %p188 = pneg %p128
        $region26: #{tpu_custom_call.1} parent=11 // pred_check_branch
          %190 = sbr.rel (%p188) target = $region28
        $region27: #{tpu_custom_call.1} parent=11 // pred_region
          _
        $region28: #{tpu_custom_call.1} parent=11 // pred_fallthru
          _
      $region12: #{tpu_custom_call.1} parent=5 // pred_fallthru
        _
      %p191 = scmp.lt.s32.totalorder %s18, 2
      // Predicated region
      $region29: #{tpu_custom_call.1} parent=5 // pred_check
        %p192 = pneg %p191
      $region30: #{tpu_custom_call.1} parent=5 // pred_check_branch
        %194 = sbr.rel (%p192) target = $region32
      $region31: #{tpu_custom_call.1} parent=5 // pred_region
        // Predicated region
        $region33: #{tpu_custom_call.1} parent=31 // pred_check
          %p195 = pneg %p38
        $region34: #{tpu_custom_call.1} parent=31 // pred_check_branch
          %197 = sbr.rel (%p195) target = $region36
        $region35: #{tpu_custom_call.1} parent=31 // pred_region
          %s198 = sand.u32 %s28, 1
          %s199 = scalar_lea.sflag [#allocation3], %s198
          %s200 = sand.u32 %s28, 1
          %s201 = smul.addr %s200, 304
          %s202 = scalar_lea.vmem [#allocation2], %s201
          %s203 = smul.u32 38, %s18
          %s204 = ssub.s32 75, %s203
          %p205 = scmp.lt.s32.totalorder %s204, 38
          %s206 = scalar_select %p205, %s204, 38
          %s207 = smul.u32 128, %s206
          %s209 = ssub.s32 4864, %s207
          %210 = vsyncadd %s199, %s209
          %p211 = scmp.ne.s32.totalorder 0, %s207
          %s212 = smul.addr %s203, 128
          %s213 = scalar_lea.hbm %s0, %s212
          %s214 = smul.u32 8, %s206
          %s215 = sshll.u32 %s202, 4
          %s216 = int_to_ptr.vmem [resolvable:$true] %s215
          %s217 = sshll.u32 %s214, 4
          %221 = dma.hbm_to_vmem [thread:$0]  (%p211), %s213, %s217, %s216, %s199, 128, 128, 8
        $region36: #{tpu_custom_call.1} parent=31 // pred_fallthru
          _
      $region32: #{tpu_custom_call.1} parent=5 // pred_fallthru
        _
      %p222 = scmp.le.s32.totalorder 1, %s18
      %p223 = scmp.lt.s32.totalorder %s18, 3
      %p224 = pnand %p222, %p223
      %p225 = pneg %p224
      // Predicated region
      $region37: #{tpu_custom_call.1} parent=5 // pred_check
        _
      $region38: #{tpu_custom_call.1} parent=5 // pred_check_branch
        %227 = sbr.rel (%p224) target = $region40
      $region39: #{tpu_custom_call.1} parent=5 // pred_region
        %s228 = ssub.s32 %s18, 1
        %s229 = sand.u32 %s31, 1
        %s230 = scalar_lea.sflag [#allocation3], %s229
        %s231 = sand.u32 %s31, 1
        %s232 = smul.addr %s231, 304
        %s233 = scalar_lea.vmem [#allocation2], %s232
        // Predicated region
        $region41: #{tpu_custom_call.1} parent=39 // pred_check
          %p234 = pneg %p44
        $region42: #{tpu_custom_call.1} parent=39 // pred_check_branch
          %236 = sbr.rel (%p234) target = $region44
        $region43: #{tpu_custom_call.1} parent=39 // pred_region
          %237 = dma.done %s230, 4864
        $region44: #{tpu_custom_call.1} parent=39 // pred_fallthru
          _
        // Predicated region
        $region45: #{tpu_custom_call.1} parent=39 // pred_check
          %p238 = pneg %p107
        $region46: #{tpu_custom_call.1} parent=39 // pred_check_branch
          %240 = sbr.rel (%p238) target = $region48
        $region47: #{tpu_custom_call.1} parent=39 // pred_region
          %241 = dma.done [#allocation6], 2048
        $region48: #{tpu_custom_call.1} parent=39 // pred_fallthru
          _
        %s242 = sand.u32 %s31, 1
        %s243 = scalar_lea.sflag [#allocation3], %s242
        %s244 = sand.u32 %s31, 1
        %s245 = smul.addr %s244, 304
        %s246 = scalar_lea.vmem [#allocation2], %s245
        %p247 = pneg %p44
        %p248 = pneg %p41
        %p249 = pneg %p65
        %p250 = pneg %p62
        %p251 = pneg %p86
        %p252 = pneg %p83
        %p253 = pneg %p107
        %p254 = pneg %p104
        %p255 = pneg %p128
        %p256 = pneg %p125
        %p257 = pneg %p154
        %p258 = pneg %p151
        %s259 = sand.u32 %s141, 1
        %s260 = scalar_lea.sflag [#allocation4], %s259
        %s261 = sand.u32 %s141, 1
        %s262 = smul.addr %s261, 304
        %s263 = scalar_lea.vmem [#allocation7], %s262
        %s264 = smul.u32 38, %s23
        %s265 = ssub.s32 75, %s264
        %p266 = scmp.lt.s32.totalorder %s265, 38
        %s267 = scalar_select %p266, %s265, 38
        %s268 = smul.u32 128, %s267
        %s269 = smul.u32 38, %s23
        %s270 = ssub.s32 75, %s269
        %p271 = scmp.lt.s32.totalorder %s270, 38
        %s272 = scalar_select %p271, %s270, 38
        %s273 = smul.u32 128, %s272
        %v274 = vld [vmem:[%s233] sm:$0xff]
        %v275 = vld [vmem:[%s233 + $0x8] sm:$0xff]
        %v276 = vld [vmem:[%s233 + $0x10] sm:$0xff]
        %v277 = vld [vmem:[%s233 + $0x18] sm:$0xff]
        %v278 = vld [vmem:[%s233 + $0x20] sm:$0xff]
        %v279 = vld [vmem:[%s233 + $0x28] sm:$0xff]
        %v280 = vld [vmem:[%s233 + $0x30] sm:$0xff]
        %v281 = vld [vmem:[%s233 + $0x38] sm:$0xff]
        %v282 = vld [vmem:[%s233 + $0x40] sm:$0xff]
        %v283 = vld [vmem:[%s233 + $0x48] sm:$0xff]
        %v284 = vld [vmem:[%s233 + $0x50] sm:$0xff]
        %v285 = vld [vmem:[%s233 + $0x58] sm:$0xff]
        %v286 = vld [vmem:[%s233 + $0x60] sm:$0xff]
        %v287 = vld [vmem:[%s233 + $0x68] sm:$0xff]
        %v288 = vld [vmem:[%s233 + $0x70] sm:$0xff]
        %v289 = vld [vmem:[%s233 + $0x78] sm:$0xff]
        %v290 = vld [vmem:[%s233 + $0x80] sm:$0xff]
        %v291 = vld [vmem:[%s233 + $0x88] sm:$0xff]
        %v292 = vld [vmem:[%s233 + $0x90] sm:$0xff]
        %v293 = vld [vmem:[%s233 + $0x98] sm:$0xff]
        %v294 = vld [vmem:[%s233 + $0xa0] sm:$0xff]
        %v295 = vld [vmem:[%s233 + $0xa8] sm:$0xff]
        %v296 = vld [vmem:[%s233 + $0xb0] sm:$0xff]
        %v297 = vld [vmem:[%s233 + $0xb8] sm:$0xff]
        %v298 = vld [vmem:[%s233 + $0xc0] sm:$0xff]
        %v299 = vld [vmem:[%s233 + $0xc8] sm:$0xff]
        %v300 = vld [vmem:[%s233 + $0xd0] sm:$0xff]
        %v301 = vld [vmem:[%s233 + $0xd8] sm:$0xff]
        %v302 = vld [vmem:[%s233 + $0xe0] sm:$0xff]
        %v303 = vld [vmem:[%s233 + $0xe8] sm:$0xff]
        %v304 = vld [vmem:[%s233 + $0xf0] sm:$0xff]
        %v305 = vld [vmem:[%s233 + $0xf8] sm:$0xff]
        %v306 = vld [vmem:[%s233 + $0x100] sm:$0xff]
        %v307 = vld [vmem:[%s233 + $0x108] sm:$0xff]
        %v308 = vld [vmem:[%s233 + $0x110] sm:$0xff]
        %v309 = vld [vmem:[%s233 + $0x118] sm:$0xff]
        %v310 = vld [vmem:[%s233 + $0x120] sm:$0xff]
        %v311 = vld [vmem:[%s233 + $0x128] sm:$0xff]
        %312 = vadd.xlane.f32.xlu0 %v274
        %v313 = vpop.xlane.xlu0 %312
        %314 = vadd.xlane.f32.xlu0 %v275
        %v315 = vpop.xlane.xlu0 %314
        %316 = vadd.xlane.f32.xlu0 %v276
        %v317 = vpop.xlane.xlu0 %316
        %318 = vadd.xlane.f32.xlu0 %v277
        %v319 = vpop.xlane.xlu0 %318
        %320 = vadd.xlane.f32.xlu0 %v278
        %v321 = vpop.xlane.xlu0 %320
        %322 = vadd.xlane.f32.xlu0 %v279
        %v323 = vpop.xlane.xlu0 %322
        %324 = vadd.xlane.f32.xlu0 %v280
        %v325 = vpop.xlane.xlu0 %324
        %326 = vadd.xlane.f32.xlu0 %v281
        %v327 = vpop.xlane.xlu0 %326
        %328 = vadd.xlane.f32.xlu0 %v282
        %v329 = vpop.xlane.xlu0 %328
        %330 = vadd.xlane.f32.xlu0 %v283
        %v331 = vpop.xlane.xlu0 %330
        %332 = vadd.xlane.f32.xlu0 %v284
        %v333 = vpop.xlane.xlu0 %332
        %334 = vadd.xlane.f32.xlu0 %v285
        %v335 = vpop.xlane.xlu0 %334
        %336 = vadd.xlane.f32.xlu0 %v286
        %v337 = vpop.xlane.xlu0 %336
        %338 = vadd.xlane.f32.xlu0 %v287
        %v339 = vpop.xlane.xlu0 %338
        %340 = vadd.xlane.f32.xlu0 %v288
        %v341 = vpop.xlane.xlu0 %340
        %342 = vadd.xlane.f32.xlu0 %v289
        %v343 = vpop.xlane.xlu0 %342
        %344 = vadd.xlane.f32.xlu0 %v290
        %v345 = vpop.xlane.xlu0 %344
        %346 = vadd.xlane.f32.xlu0 %v291
        %v347 = vpop.xlane.xlu0 %346
        %348 = vadd.xlane.f32.xlu0 %v292
        %v349 = vpop.xlane.xlu0 %348
        %350 = vadd.xlane.f32.xlu0 %v293
        %v351 = vpop.xlane.xlu0 %350
        %352 = vadd.xlane.f32.xlu0 %v294
        %v353 = vpop.xlane.xlu0 %352
        %354 = vadd.xlane.f32.xlu0 %v295
        %v355 = vpop.xlane.xlu0 %354
        %356 = vadd.xlane.f32.xlu0 %v296
        %v357 = vpop.xlane.xlu0 %356
        %358 = vadd.xlane.f32.xlu0 %v297
        %v359 = vpop.xlane.xlu0 %358
        %360 = vadd.xlane.f32.xlu0 %v298
        %v361 = vpop.xlane.xlu0 %360
        %362 = vadd.xlane.f32.xlu0 %v299
        %v363 = vpop.xlane.xlu0 %362
        %364 = vadd.xlane.f32.xlu0 %v300
        %v365 = vpop.xlane.xlu0 %364
        %366 = vadd.xlane.f32.xlu0 %v301
        %v367 = vpop.xlane.xlu0 %366
        %368 = vadd.xlane.f32.xlu0 %v302
        %v369 = vpop.xlane.xlu0 %368
        %370 = vadd.xlane.f32.xlu0 %v303
        %v371 = vpop.xlane.xlu0 %370
        %372 = vadd.xlane.f32.xlu0 %v304
        %v373 = vpop.xlane.xlu0 %372
        %374 = vadd.xlane.f32.xlu0 %v305
        %v375 = vpop.xlane.xlu0 %374
        %376 = vadd.xlane.f32.xlu0 %v306
        %v377 = vpop.xlane.xlu0 %376
        %378 = vadd.xlane.f32.xlu0 %v307
        %v379 = vpop.xlane.xlu0 %378
        %380 = vadd.xlane.f32.xlu0 %v308
        %v381 = vpop.xlane.xlu0 %380
        %382 = vadd.xlane.f32.xlu0 %v309
        %v383 = vpop.xlane.xlu0 %382
        %384 = vadd.xlane.f32.xlu0 %v310
        %v385 = vpop.xlane.xlu0 %384
        %386 = vadd.xlane.f32.xlu0 %v311
        %v387 = vpop.xlane.xlu0 %386
        %v388 = vmul.f32 %v274, %v274
        %v389 = vmul.f32 %v275, %v275
        %v390 = vmul.f32 %v276, %v276
        %v391 = vmul.f32 %v277, %v277
        %v392 = vmul.f32 %v278, %v278
        %v393 = vmul.f32 %v279, %v279
        %v394 = vmul.f32 %v280, %v280
        %v395 = vmul.f32 %v281, %v281
        %v396 = vmul.f32 %v282, %v282
        %v397 = vmul.f32 %v283, %v283
        %v398 = vmul.f32 %v284, %v284
        %v399 = vmul.f32 %v285, %v285
        %v400 = vmul.f32 %v286, %v286
        %v401 = vmul.f32 %v287, %v287
        %v402 = vmul.f32 %v288, %v288
        %v403 = vmul.f32 %v289, %v289
        %v404 = vmul.f32 %v290, %v290
        %v405 = vmul.f32 %v291, %v291
        %v406 = vmul.f32 %v292, %v292
        %v407 = vmul.f32 %v293, %v293
        %v408 = vmul.f32 %v294, %v294
        %v409 = vmul.f32 %v295, %v295
        %v410 = vmul.f32 %v296, %v296
        %v411 = vmul.f32 %v297, %v297
        %v412 = vmul.f32 %v298, %v298
        %v413 = vmul.f32 %v299, %v299
        %v414 = vmul.f32 %v300, %v300
        %v415 = vmul.f32 %v301, %v301
        %v416 = vmul.f32 %v302, %v302
        %v417 = vmul.f32 %v303, %v303
        %v418 = vmul.f32 %v304, %v304
        %v419 = vmul.f32 %v305, %v305
        %v420 = vmul.f32 %v306, %v306
        %v421 = vmul.f32 %v307, %v307
        %v422 = vmul.f32 %v308, %v308
        %v423 = vmul.f32 %v309, %v309
        %v424 = vmul.f32 %v310, %v310
        %v425 = vmul.f32 %v311, %v311
        %426 = vadd.xlane.f32.xlu0 %v388
        %v427 = vpop.xlane.xlu0 %426
        %428 = vadd.xlane.f32.xlu0 %v389
        %v429 = vpop.xlane.xlu0 %428
        %430 = vadd.xlane.f32.xlu0 %v390
        %v431 = vpop.xlane.xlu0 %430
        %432 = vadd.xlane.f32.xlu0 %v391
        %v433 = vpop.xlane.xlu0 %432
        %434 = vadd.xlane.f32.xlu0 %v392
        %v435 = vpop.xlane.xlu0 %434
        %436 = vadd.xlane.f32.xlu0 %v393
        %v437 = vpop.xlane.xlu0 %436
        %438 = vadd.xlane.f32.xlu0 %v394
        %v439 = vpop.xlane.xlu0 %438
        %440 = vadd.xlane.f32.xlu0 %v395
        %v441 = vpop.xlane.xlu0 %440
        %442 = vadd.xlane.f32.xlu0 %v396
        %v443 = vpop.xlane.xlu0 %442
        %444 = vadd.xlane.f32.xlu0 %v397
        %v445 = vpop.xlane.xlu0 %444
        %446 = vadd.xlane.f32.xlu0 %v398
        %v447 = vpop.xlane.xlu0 %446
        %448 = vadd.xlane.f32.xlu0 %v399
        %v449 = vpop.xlane.xlu0 %448
        %450 = vadd.xlane.f32.xlu0 %v400
        %v451 = vpop.xlane.xlu0 %450
        %452 = vadd.xlane.f32.xlu0 %v401
        %v453 = vpop.xlane.xlu0 %452
        %454 = vadd.xlane.f32.xlu0 %v402
        %v455 = vpop.xlane.xlu0 %454
        %456 = vadd.xlane.f32.xlu0 %v403
        %v457 = vpop.xlane.xlu0 %456
        %458 = vadd.xlane.f32.xlu0 %v404
        %v459 = vpop.xlane.xlu0 %458
        %460 = vadd.xlane.f32.xlu0 %v405
        %v461 = vpop.xlane.xlu0 %460
        %462 = vadd.xlane.f32.xlu0 %v406
        %v463 = vpop.xlane.xlu0 %462
        %464 = vadd.xlane.f32.xlu0 %v407
        %v465 = vpop.xlane.xlu0 %464
        %466 = vadd.xlane.f32.xlu0 %v408
        %v467 = vpop.xlane.xlu0 %466
        %468 = vadd.xlane.f32.xlu0 %v409
        %v469 = vpop.xlane.xlu0 %468
        %470 = vadd.xlane.f32.xlu0 %v410
        %v471 = vpop.xlane.xlu0 %470
        %472 = vadd.xlane.f32.xlu0 %v411
        %v473 = vpop.xlane.xlu0 %472
        %474 = vadd.xlane.f32.xlu0 %v412
        %v475 = vpop.xlane.xlu0 %474
        %476 = vadd.xlane.f32.xlu0 %v413
        %v477 = vpop.xlane.xlu0 %476
        %478 = vadd.xlane.f32.xlu0 %v414
        %v479 = vpop.xlane.xlu0 %478
        %480 = vadd.xlane.f32.xlu0 %v415
        %v481 = vpop.xlane.xlu0 %480
        %482 = vadd.xlane.f32.xlu0 %v416
        %v483 = vpop.xlane.xlu0 %482
        %484 = vadd.xlane.f32.xlu0 %v417
        %v485 = vpop.xlane.xlu0 %484
        %486 = vadd.xlane.f32.xlu0 %v418
        %v487 = vpop.xlane.xlu0 %486
        %488 = vadd.xlane.f32.xlu0 %v419
        %v489 = vpop.xlane.xlu0 %488
        %490 = vadd.xlane.f32.xlu0 %v420
        %v491 = vpop.xlane.xlu0 %490
        %492 = vadd.xlane.f32.xlu0 %v421
        %v493 = vpop.xlane.xlu0 %492
        %494 = vadd.xlane.f32.xlu0 %v422
        %v495 = vpop.xlane.xlu0 %494
        %496 = vadd.xlane.f32.xlu0 %v423
        %v497 = vpop.xlane.xlu0 %496
        %498 = vadd.xlane.f32.xlu0 %v424
        %v499 = vpop.xlane.xlu0 %498
        %500 = vadd.xlane.f32.xlu0 %v425
        %v501 = vpop.xlane.xlu0 %500
        %v502 = vmul.f32 %v313, 0.0078125
        %v503 = vmul.f32 %v315, 0.0078125
        %v504 = vmul.f32 %v317, 0.0078125
        %v505 = vmul.f32 %v319, 0.0078125
        %v506 = vmul.f32 %v321, 0.0078125
        %v507 = vmul.f32 %v323, 0.0078125
        %v508 = vmul.f32 %v325, 0.0078125
        %v509 = vmul.f32 %v327, 0.0078125
        %v510 = vmul.f32 %v329, 0.0078125
        %v511 = vmul.f32 %v331, 0.0078125
        %v512 = vmul.f32 %v333, 0.0078125
        %v513 = vmul.f32 %v335, 0.0078125
        %v514 = vmul.f32 %v337, 0.0078125
        %v515 = vmul.f32 %v339, 0.0078125
        %v516 = vmul.f32 %v341, 0.0078125
        %v517 = vmul.f32 %v343, 0.0078125
        %v518 = vmul.f32 %v345, 0.0078125
        %v519 = vmul.f32 %v347, 0.0078125
        %v520 = vmul.f32 %v349, 0.0078125
        %v521 = vmul.f32 %v351, 0.0078125
        %v522 = vmul.f32 %v353, 0.0078125
        %v523 = vmul.f32 %v355, 0.0078125
        %v524 = vmul.f32 %v357, 0.0078125
        %v525 = vmul.f32 %v359, 0.0078125
        %v526 = vmul.f32 %v361, 0.0078125
        %v527 = vmul.f32 %v363, 0.0078125
        %v528 = vmul.f32 %v365, 0.0078125
        %v529 = vmul.f32 %v367, 0.0078125
        %v530 = vmul.f32 %v369, 0.0078125
        %v531 = vmul.f32 %v371, 0.0078125
        %v532 = vmul.f32 %v373, 0.0078125
        %v533 = vmul.f32 %v375, 0.0078125
        %v534 = vmul.f32 %v377, 0.0078125
        %v535 = vmul.f32 %v379, 0.0078125
        %v536 = vmul.f32 %v381, 0.0078125
        %v537 = vmul.f32 %v383, 0.0078125
        %v538 = vmul.f32 %v385, 0.0078125
        %v539 = vmul.f32 %v387, 0.0078125
        %v540 = vmul.f32 %v313, %v502
        %v541 = vmul.f32 %v315, %v503
        %v542 = vmul.f32 %v317, %v504
        %v543 = vmul.f32 %v319, %v505
        %v544 = vmul.f32 %v321, %v506
        %v545 = vmul.f32 %v323, %v507
        %v546 = vmul.f32 %v325, %v508
        %v547 = vmul.f32 %v327, %v509
        %v548 = vmul.f32 %v329, %v510
        %v549 = vmul.f32 %v331, %v511
        %v550 = vmul.f32 %v333, %v512
        %v551 = vmul.f32 %v335, %v513
        %v552 = vmul.f32 %v337, %v514
        %v553 = vmul.f32 %v339, %v515
        %v554 = vmul.f32 %v341, %v516
        %v555 = vmul.f32 %v343, %v517
        %v556 = vmul.f32 %v345, %v518
        %v557 = vmul.f32 %v347, %v519
        %v558 = vmul.f32 %v349, %v520
        %v559 = vmul.f32 %v351, %v521
        %v560 = vmul.f32 %v353, %v522
        %v561 = vmul.f32 %v355, %v523
        %v562 = vmul.f32 %v357, %v524
        %v563 = vmul.f32 %v359, %v525
        %v564 = vmul.f32 %v361, %v526
        %v565 = vmul.f32 %v363, %v527
        %v566 = vmul.f32 %v365, %v528
        %v567 = vmul.f32 %v367, %v529
        %v568 = vmul.f32 %v369, %v530
        %v569 = vmul.f32 %v371, %v531
        %v570 = vmul.f32 %v373, %v532
        %v571 = vmul.f32 %v375, %v533
        %v572 = vmul.f32 %v377, %v534
        %v573 = vmul.f32 %v379, %v535
        %v574 = vmul.f32 %v381, %v536
        %v575 = vmul.f32 %v383, %v537
        %v576 = vmul.f32 %v385, %v538
        %v577 = vmul.f32 %v387, %v539
        %v578 = vsub.f32 %v427, %v540
        %v579 = vsub.f32 %v429, %v541
        %v580 = vsub.f32 %v431, %v542
        %v581 = vsub.f32 %v433, %v543
        %v582 = vsub.f32 %v435, %v544
        %v583 = vsub.f32 %v437, %v545
        %v584 = vsub.f32 %v439, %v546
        %v585 = vsub.f32 %v441, %v547
        %v586 = vsub.f32 %v443, %v548
        %v587 = vsub.f32 %v445, %v549
        %v588 = vsub.f32 %v447, %v550
        %v589 = vsub.f32 %v449, %v551
        %v590 = vsub.f32 %v451, %v552
        %v591 = vsub.f32 %v453, %v553
        %v592 = vsub.f32 %v455, %v554
        %v593 = vsub.f32 %v457, %v555
        %v594 = vsub.f32 %v459, %v556
        %v595 = vsub.f32 %v461, %v557
        %v596 = vsub.f32 %v463, %v558
        %v597 = vsub.f32 %v465, %v559
        %v598 = vsub.f32 %v467, %v560
        %v599 = vsub.f32 %v469, %v561
        %v600 = vsub.f32 %v471, %v562
        %v601 = vsub.f32 %v473, %v563
        %v602 = vsub.f32 %v475, %v564
        %v603 = vsub.f32 %v477, %v565
        %v604 = vsub.f32 %v479, %v566
        %v605 = vsub.f32 %v481, %v567
        %v606 = vsub.f32 %v483, %v568
        %v607 = vsub.f32 %v485, %v569
        %v608 = vsub.f32 %v487, %v570
        %v609 = vsub.f32 %v489, %v571
        %v610 = vsub.f32 %v491, %v572
        %v611 = vsub.f32 %v493, %v573
        %v612 = vsub.f32 %v495, %v574
        %v613 = vsub.f32 %v497, %v575
        %v614 = vsub.f32 %v499, %v576
        %v615 = vsub.f32 %v501, %v577
        %v616 = vmul.f32 %v578, 0.007874016
        %v617 = vmul.f32 %v579, 0.007874016
        %v618 = vmul.f32 %v580, 0.007874016
        %v619 = vmul.f32 %v581, 0.007874016
        %v620 = vmul.f32 %v582, 0.007874016
        %v621 = vmul.f32 %v583, 0.007874016
        %v622 = vmul.f32 %v584, 0.007874016
        %v623 = vmul.f32 %v585, 0.007874016
        %v624 = vmul.f32 %v586, 0.007874016
        %v625 = vmul.f32 %v587, 0.007874016
        %v626 = vmul.f32 %v588, 0.007874016
        %v627 = vmul.f32 %v589, 0.007874016
        %v628 = vmul.f32 %v590, 0.007874016
        %v629 = vmul.f32 %v591, 0.007874016
        %v630 = vmul.f32 %v592, 0.007874016
        %v631 = vmul.f32 %v593, 0.007874016
        %v632 = vmul.f32 %v594, 0.007874016
        %v633 = vmul.f32 %v595, 0.007874016
        %v634 = vmul.f32 %v596, 0.007874016
        %v635 = vmul.f32 %v597, 0.007874016
        %v636 = vmul.f32 %v598, 0.007874016
        %v637 = vmul.f32 %v599, 0.007874016
        %v638 = vmul.f32 %v600, 0.007874016
        %v639 = vmul.f32 %v601, 0.007874016
        %v640 = vmul.f32 %v602, 0.007874016
        %v641 = vmul.f32 %v603, 0.007874016
        %v642 = vmul.f32 %v604, 0.007874016
        %v643 = vmul.f32 %v605, 0.007874016
        %v644 = vmul.f32 %v606, 0.007874016
        %v645 = vmul.f32 %v607, 0.007874016
        %v646 = vmul.f32 %v608, 0.007874016
        %v647 = vmul.f32 %v609, 0.007874016
        %v648 = vmul.f32 %v610, 0.007874016
        %v649 = vmul.f32 %v611, 0.007874016
        %v650 = vmul.f32 %v612, 0.007874016
        %v651 = vmul.f32 %v613, 0.007874016
        %v652 = vmul.f32 %v614, 0.007874016
        %v653 = vmul.f32 %v615, 0.007874016
        %v654 = vmax.f32 %v616, 0.0
        %v655 = vmax.f32 %v617, 0.0
        %v656 = vmax.f32 %v618, 0.0
        %v657 = vmax.f32 %v619, 0.0
        %v658 = vmax.f32 %v620, 0.0
        %v659 = vmax.f32 %v621, 0.0
        %v660 = vmax.f32 %v622, 0.0
        %v661 = vmax.f32 %v623, 0.0
        %v662 = vmax.f32 %v624, 0.0
        %v663 = vmax.f32 %v625, 0.0
        %v664 = vmax.f32 %v626, 0.0
        %v665 = vmax.f32 %v627, 0.0
        %v666 = vmax.f32 %v628, 0.0
        %v667 = vmax.f32 %v629, 0.0
        %v668 = vmax.f32 %v630, 0.0
        %v669 = vmax.f32 %v631, 0.0
        %v670 = vmax.f32 %v632, 0.0
        %v671 = vmax.f32 %v633, 0.0
        %v672 = vmax.f32 %v634, 0.0
        %v673 = vmax.f32 %v635, 0.0
        %v674 = vmax.f32 %v636, 0.0
        %v675 = vmax.f32 %v637, 0.0
        %v676 = vmax.f32 %v638, 0.0
        %v677 = vmax.f32 %v639, 0.0
        %v678 = vmax.f32 %v640, 0.0
        %v679 = vmax.f32 %v641, 0.0
        %v680 = vmax.f32 %v642, 0.0
        %v681 = vmax.f32 %v643, 0.0
        %v682 = vmax.f32 %v644, 0.0
        %v683 = vmax.f32 %v645, 0.0
        %v684 = vmax.f32 %v646, 0.0
        %v685 = vmax.f32 %v647, 0.0
        %v686 = vmax.f32 %v648, 0.0
        %v687 = vmax.f32 %v649, 0.0
        %v688 = vmax.f32 %v650, 0.0
        %v689 = vmax.f32 %v651, 0.0
        %v690 = vmax.f32 %v652, 0.0
        %v691 = vmax.f32 %v653, 0.0
        %v692 = vrsqrt.pop %v654
        %v693 = vmul.f32 %v654, %v692
        %vm694 = vcmp.eq.f32.partialorder %v654, inf
        %v695 = vsel %vm694, %v654, %v693
        %vm696 = vcmp.eq.f32.partialorder %v654, 0.0
        %v697 = vand.u32 %v654, 2147483648
        %v698 = vsel %vm696, %v697, %v695
        %v699 = vrsqrt.pop %v655
        %v700 = vmul.f32 %v655, %v699
        %vm701 = vcmp.eq.f32.partialorder %v655, inf
        %v702 = vsel %vm701, %v655, %v700
        %vm703 = vcmp.eq.f32.partialorder %v655, 0.0
        %v704 = vand.u32 %v655, 2147483648
        %v705 = vsel %vm703, %v704, %v702
        %v706 = vrsqrt.pop %v656
        %v707 = vmul.f32 %v656, %v706
        %vm708 = vcmp.eq.f32.partialorder %v656, inf
        %v709 = vsel %vm708, %v656, %v707
        %vm710 = vcmp.eq.f32.partialorder %v656, 0.0
        %v711 = vand.u32 %v656, 2147483648
        %v712 = vsel %vm710, %v711, %v709
        %v713 = vrsqrt.pop %v657
        %v714 = vmul.f32 %v657, %v713
        %vm715 = vcmp.eq.f32.partialorder %v657, inf
        %v716 = vsel %vm715, %v657, %v714
        %vm717 = vcmp.eq.f32.partialorder %v657, 0.0
        %v718 = vand.u32 %v657, 2147483648
        %v719 = vsel %vm717, %v718, %v716
        %v720 = vrsqrt.pop %v658
        %v721 = vmul.f32 %v658, %v720
        %vm722 = vcmp.eq.f32.partialorder %v658, inf
        %v723 = vsel %vm722, %v658, %v721
        %vm724 = vcmp.eq.f32.partialorder %v658, 0.0
        %v725 = vand.u32 %v658, 2147483648
        %v726 = vsel %vm724, %v725, %v723
        %v727 = vrsqrt.pop %v659
        %v728 = vmul.f32 %v659, %v727
        %vm729 = vcmp.eq.f32.partialorder %v659, inf
        %v730 = vsel %vm729, %v659, %v728
        %vm731 = vcmp.eq.f32.partialorder %v659, 0.0
        %v732 = vand.u32 %v659, 2147483648
        %v733 = vsel %vm731, %v732, %v730
        %v734 = vrsqrt.pop %v660
        %v735 = vmul.f32 %v660, %v734
        %vm736 = vcmp.eq.f32.partialorder %v660, inf
        %v737 = vsel %vm736, %v660, %v735
        %vm738 = vcmp.eq.f32.partialorder %v660, 0.0
        %v739 = vand.u32 %v660, 2147483648
        %v740 = vsel %vm738, %v739, %v737
        %v741 = vrsqrt.pop %v661
        %v742 = vmul.f32 %v661, %v741
        %vm743 = vcmp.eq.f32.partialorder %v661, inf
        %v744 = vsel %vm743, %v661, %v742
        %vm745 = vcmp.eq.f32.partialorder %v661, 0.0
        %v746 = vand.u32 %v661, 2147483648
        %v747 = vsel %vm745, %v746, %v744
        %v748 = vrsqrt.pop %v662
        %v749 = vmul.f32 %v662, %v748
        %vm750 = vcmp.eq.f32.partialorder %v662, inf
        %v751 = vsel %vm750, %v662, %v749
        %vm752 = vcmp.eq.f32.partialorder %v662, 0.0
        %v753 = vand.u32 %v662, 2147483648
        %v754 = vsel %vm752, %v753, %v751
        %v755 = vrsqrt.pop %v663
        %v756 = vmul.f32 %v663, %v755
        %vm757 = vcmp.eq.f32.partialorder %v663, inf
        %v758 = vsel %vm757, %v663, %v756
        %vm759 = vcmp.eq.f32.partialorder %v663, 0.0
        %v760 = vand.u32 %v663, 2147483648
        %v761 = vsel %vm759, %v760, %v758
        %v762 = vrsqrt.pop %v664
        %v763 = vmul.f32 %v664, %v762
        %vm764 = vcmp.eq.f32.partialorder %v664, inf
        %v765 = vsel %vm764, %v664, %v763
        %vm766 = vcmp.eq.f32.partialorder %v664, 0.0
        %v767 = vand.u32 %v664, 2147483648
        %v768 = vsel %vm766, %v767, %v765
        %v769 = vrsqrt.pop %v665
        %v770 = vmul.f32 %v665, %v769
        %vm771 = vcmp.eq.f32.partialorder %v665, inf
        %v772 = vsel %vm771, %v665, %v770
        %vm773 = vcmp.eq.f32.partialorder %v665, 0.0
        %v774 = vand.u32 %v665, 2147483648
        %v775 = vsel %vm773, %v774, %v772
        %v776 = vrsqrt.pop %v666
        %v777 = vmul.f32 %v666, %v776
        %vm778 = vcmp.eq.f32.partialorder %v666, inf
        %v779 = vsel %vm778, %v666, %v777
        %vm780 = vcmp.eq.f32.partialorder %v666, 0.0
        %v781 = vand.u32 %v666, 2147483648
        %v782 = vsel %vm780, %v781, %v779
        %v783 = vrsqrt.pop %v667
        %v784 = vmul.f32 %v667, %v783
        %vm785 = vcmp.eq.f32.partialorder %v667, inf
        %v786 = vsel %vm785, %v667, %v784
        %vm787 = vcmp.eq.f32.partialorder %v667, 0.0
        %v788 = vand.u32 %v667, 2147483648
        %v789 = vsel %vm787, %v788, %v786
        %v790 = vrsqrt.pop %v668
        %v791 = vmul.f32 %v668, %v790
        %vm792 = vcmp.eq.f32.partialorder %v668, inf
        %v793 = vsel %vm792, %v668, %v791
        %vm794 = vcmp.eq.f32.partialorder %v668, 0.0
        %v795 = vand.u32 %v668, 2147483648
        %v796 = vsel %vm794, %v795, %v793
        %v797 = vrsqrt.pop %v669
        %v798 = vmul.f32 %v669, %v797
        %vm799 = vcmp.eq.f32.partialorder %v669, inf
        %v800 = vsel %vm799, %v669, %v798
        %vm801 = vcmp.eq.f32.partialorder %v669, 0.0
        %v802 = vand.u32 %v669, 2147483648
        %v803 = vsel %vm801, %v802, %v800
        %v804 = vrsqrt.pop %v670
        %v805 = vmul.f32 %v670, %v804
        %vm806 = vcmp.eq.f32.partialorder %v670, inf
        %v807 = vsel %vm806, %v670, %v805
        %vm808 = vcmp.eq.f32.partialorder %v670, 0.0
        %v809 = vand.u32 %v670, 2147483648
        %v810 = vsel %vm808, %v809, %v807
        %v811 = vrsqrt.pop %v671
        %v812 = vmul.f32 %v671, %v811
        %vm813 = vcmp.eq.f32.partialorder %v671, inf
        %v814 = vsel %vm813, %v671, %v812
        %vm815 = vcmp.eq.f32.partialorder %v671, 0.0
        %v816 = vand.u32 %v671, 2147483648
        %v817 = vsel %vm815, %v816, %v814
        %v818 = vrsqrt.pop %v672
        %v819 = vmul.f32 %v672, %v818
        %vm820 = vcmp.eq.f32.partialorder %v672, inf
        %v821 = vsel %vm820, %v672, %v819
        %vm822 = vcmp.eq.f32.partialorder %v672, 0.0
        %v823 = vand.u32 %v672, 2147483648
        %v824 = vsel %vm822, %v823, %v821
        %v825 = vrsqrt.pop %v673
        %v826 = vmul.f32 %v673, %v825
        %vm827 = vcmp.eq.f32.partialorder %v673, inf
        %v828 = vsel %vm827, %v673, %v826
        %vm829 = vcmp.eq.f32.partialorder %v673, 0.0
        %v830 = vand.u32 %v673, 2147483648
        %v831 = vsel %vm829, %v830, %v828
        %v832 = vrsqrt.pop %v674
        %v833 = vmul.f32 %v674, %v832
        %vm834 = vcmp.eq.f32.partialorder %v674, inf
        %v835 = vsel %vm834, %v674, %v833
        %vm836 = vcmp.eq.f32.partialorder %v674, 0.0
        %v837 = vand.u32 %v674, 2147483648
        %v838 = vsel %vm836, %v837, %v835
        %v839 = vrsqrt.pop %v675
        %v840 = vmul.f32 %v675, %v839
        %vm841 = vcmp.eq.f32.partialorder %v675, inf
        %v842 = vsel %vm841, %v675, %v840
        %vm843 = vcmp.eq.f32.partialorder %v675, 0.0
        %v844 = vand.u32 %v675, 2147483648
        %v845 = vsel %vm843, %v844, %v842
        %v846 = vrsqrt.pop %v676
        %v847 = vmul.f32 %v676, %v846
        %vm848 = vcmp.eq.f32.partialorder %v676, inf
        %v849 = vsel %vm848, %v676, %v847
        %vm850 = vcmp.eq.f32.partialorder %v676, 0.0
        %v851 = vand.u32 %v676, 2147483648
        %v852 = vsel %vm850, %v851, %v849
        %v853 = vrsqrt.pop %v677
        %v854 = vmul.f32 %v677, %v853
        %vm855 = vcmp.eq.f32.partialorder %v677, inf
        %v856 = vsel %vm855, %v677, %v854
        %vm857 = vcmp.eq.f32.partialorder %v677, 0.0
        %v858 = vand.u32 %v677, 2147483648
        %v859 = vsel %vm857, %v858, %v856
        %v860 = vrsqrt.pop %v678
        %v861 = vmul.f32 %v678, %v860
        %vm862 = vcmp.eq.f32.partialorder %v678, inf
        %v863 = vsel %vm862, %v678, %v861
        %vm864 = vcmp.eq.f32.partialorder %v678, 0.0
        %v865 = vand.u32 %v678, 2147483648
        %v866 = vsel %vm864, %v865, %v863
        %v867 = vrsqrt.pop %v679
        %v868 = vmul.f32 %v679, %v867
        %vm869 = vcmp.eq.f32.partialorder %v679, inf
        %v870 = vsel %vm869, %v679, %v868
        %vm871 = vcmp.eq.f32.partialorder %v679, 0.0
        %v872 = vand.u32 %v679, 2147483648
        %v873 = vsel %vm871, %v872, %v870
        %v874 = vrsqrt.pop %v680
        %v875 = vmul.f32 %v680, %v874
        %vm876 = vcmp.eq.f32.partialorder %v680, inf
        %v877 = vsel %vm876, %v680, %v875
        %vm878 = vcmp.eq.f32.partialorder %v680, 0.0
        %v879 = vand.u32 %v680, 2147483648
        %v880 = vsel %vm878, %v879, %v877
        %v881 = vrsqrt.pop %v681
        %v882 = vmul.f32 %v681, %v881
        %vm883 = vcmp.eq.f32.partialorder %v681, inf
        %v884 = vsel %vm883, %v681, %v882
        %vm885 = vcmp.eq.f32.partialorder %v681, 0.0
        %v886 = vand.u32 %v681, 2147483648
        %v887 = vsel %vm885, %v886, %v884
        %v888 = vrsqrt.pop %v682
        %v889 = vmul.f32 %v682, %v888
        %vm890 = vcmp.eq.f32.partialorder %v682, inf
        %v891 = vsel %vm890, %v682, %v889
        %vm892 = vcmp.eq.f32.partialorder %v682, 0.0
        %v893 = vand.u32 %v682, 2147483648
        %v894 = vsel %vm892, %v893, %v891
        %v895 = vrsqrt.pop %v683
        %v896 = vmul.f32 %v683, %v895
        %vm897 = vcmp.eq.f32.partialorder %v683, inf
        %v898 = vsel %vm897, %v683, %v896
        %vm899 = vcmp.eq.f32.partialorder %v683, 0.0
        %v900 = vand.u32 %v683, 2147483648
        %v901 = vsel %vm899, %v900, %v898
        %v902 = vrsqrt.pop %v684
        %v903 = vmul.f32 %v684, %v902
        %vm904 = vcmp.eq.f32.partialorder %v684, inf
        %v905 = vsel %vm904, %v684, %v903
        %vm906 = vcmp.eq.f32.partialorder %v684, 0.0
        %v907 = vand.u32 %v684, 2147483648
        %v908 = vsel %vm906, %v907, %v905
        %v909 = vrsqrt.pop %v685
        %v910 = vmul.f32 %v685, %v909
        %vm911 = vcmp.eq.f32.partialorder %v685, inf
        %v912 = vsel %vm911, %v685, %v910
        %vm913 = vcmp.eq.f32.partialorder %v685, 0.0
        %v914 = vand.u32 %v685, 2147483648
        %v915 = vsel %vm913, %v914, %v912
        %v916 = vrsqrt.pop %v686
        %v917 = vmul.f32 %v686, %v916
        %vm918 = vcmp.eq.f32.partialorder %v686, inf
        %v919 = vsel %vm918, %v686, %v917
        %vm920 = vcmp.eq.f32.partialorder %v686, 0.0
        %v921 = vand.u32 %v686, 2147483648
        %v922 = vsel %vm920, %v921, %v919
        %v923 = vrsqrt.pop %v687
        %v924 = vmul.f32 %v687, %v923
        %vm925 = vcmp.eq.f32.partialorder %v687, inf
        %v926 = vsel %vm925, %v687, %v924
        %vm927 = vcmp.eq.f32.partialorder %v687, 0.0
        %v928 = vand.u32 %v687, 2147483648
        %v929 = vsel %vm927, %v928, %v926
        %v930 = vrsqrt.pop %v688
        %v931 = vmul.f32 %v688, %v930
        %vm932 = vcmp.eq.f32.partialorder %v688, inf
        %v933 = vsel %vm932, %v688, %v931
        %vm934 = vcmp.eq.f32.partialorder %v688, 0.0
        %v935 = vand.u32 %v688, 2147483648
        %v936 = vsel %vm934, %v935, %v933
        %v937 = vrsqrt.pop %v689
        %v938 = vmul.f32 %v689, %v937
        %vm939 = vcmp.eq.f32.partialorder %v689, inf
        %v940 = vsel %vm939, %v689, %v938
        %vm941 = vcmp.eq.f32.partialorder %v689, 0.0
        %v942 = vand.u32 %v689, 2147483648
        %v943 = vsel %vm941, %v942, %v940
        %v944 = vrsqrt.pop %v690
        %v945 = vmul.f32 %v690, %v944
        %vm946 = vcmp.eq.f32.partialorder %v690, inf
        %v947 = vsel %vm946, %v690, %v945
        %vm948 = vcmp.eq.f32.partialorder %v690, 0.0
        %v949 = vand.u32 %v690, 2147483648
        %v950 = vsel %vm948, %v949, %v947
        %v951 = vrsqrt.pop %v691
        %v952 = vmul.f32 %v691, %v951
        %vm953 = vcmp.eq.f32.partialorder %v691, inf
        %v954 = vsel %vm953, %v691, %v952
        %vm955 = vcmp.eq.f32.partialorder %v691, 0.0
        %v956 = vand.u32 %v691, 2147483648
        %v957 = vsel %vm955, %v956, %v954
        %v958 = vadd.f32 %v698, 1e-06
        %v959 = vadd.f32 %v705, 1e-06
        %v960 = vadd.f32 %v712, 1e-06
        %v961 = vadd.f32 %v719, 1e-06
        %v962 = vadd.f32 %v726, 1e-06
        %v963 = vadd.f32 %v733, 1e-06
        %v964 = vadd.f32 %v740, 1e-06
        %v965 = vadd.f32 %v747, 1e-06
        %v966 = vadd.f32 %v754, 1e-06
        %v967 = vadd.f32 %v761, 1e-06
        %v968 = vadd.f32 %v768, 1e-06
        %v969 = vadd.f32 %v775, 1e-06
        %v970 = vadd.f32 %v782, 1e-06
        %v971 = vadd.f32 %v789, 1e-06
        %v972 = vadd.f32 %v796, 1e-06
        %v973 = vadd.f32 %v803, 1e-06
        %v974 = vadd.f32 %v810, 1e-06
        %v975 = vadd.f32 %v817, 1e-06
        %v976 = vadd.f32 %v824, 1e-06
        %v977 = vadd.f32 %v831, 1e-06
        %v978 = vadd.f32 %v838, 1e-06
        %v979 = vadd.f32 %v845, 1e-06
        %v980 = vadd.f32 %v852, 1e-06
        %v981 = vadd.f32 %v859, 1e-06
        %v982 = vadd.f32 %v866, 1e-06
        %v983 = vadd.f32 %v873, 1e-06
        %v984 = vadd.f32 %v880, 1e-06
        %v985 = vadd.f32 %v887, 1e-06
        %v986 = vadd.f32 %v894, 1e-06
        %v987 = vadd.f32 %v901, 1e-06
        %v988 = vadd.f32 %v908, 1e-06
        %v989 = vadd.f32 %v915, 1e-06
        %v990 = vadd.f32 %v922, 1e-06
        %v991 = vadd.f32 %v929, 1e-06
        %v992 = vadd.f32 %v936, 1e-06
        %v993 = vadd.f32 %v943, 1e-06
        %v994 = vadd.f32 %v950, 1e-06
        %v995 = vadd.f32 %v957, 1e-06
        %v996 = vrcp.pop %v958
        %v997 = vrcp.pop %v959
        %v998 = vrcp.pop %v960
        %v999 = vrcp.pop %v961
        %v1000 = vrcp.pop %v962
        %v1001 = vrcp.pop %v963
        %v1002 = vrcp.pop %v964
        %v1003 = vrcp.pop %v965
        %v1004 = vrcp.pop %v966
        %v1005 = vrcp.pop %v967
        %v1006 = vrcp.pop %v968
        %v1007 = vrcp.pop %v969
        %v1008 = vrcp.pop %v970
        %v1009 = vrcp.pop %v971
        %v1010 = vrcp.pop %v972
        %v1011 = vrcp.pop %v973
        %v1012 = vrcp.pop %v974
        %v1013 = vrcp.pop %v975
        %v1014 = vrcp.pop %v976
        %v1015 = vrcp.pop %v977
        %v1016 = vrcp.pop %v978
        %v1017 = vrcp.pop %v979
        %v1018 = vrcp.pop %v980
        %v1019 = vrcp.pop %v981
        %v1020 = vrcp.pop %v982
        %v1021 = vrcp.pop %v983
        %v1022 = vrcp.pop %v984
        %v1023 = vrcp.pop %v985
        %v1024 = vrcp.pop %v986
        %v1025 = vrcp.pop %v987
        %v1026 = vrcp.pop %v988
        %v1027 = vrcp.pop %v989
        %v1028 = vrcp.pop %v990
        %v1029 = vrcp.pop %v991
        %v1030 = vrcp.pop %v992
        %v1031 = vrcp.pop %v993
        %v1032 = vrcp.pop %v994
        %v1033 = vrcp.pop %v995
        %v1034 = vld [vmem:[%s1] sm:$0x1]
        %v1035 = vld [vmem:[%s2] sm:$0x1]
        %v1036 = vsub.f32 %v274, %v502
        %v1037 = vsub.f32 %v275, %v503
        %v1038 = vsub.f32 %v276, %v504
        %v1039 = vsub.f32 %v277, %v505
        %v1040 = vsub.f32 %v278, %v506
        %v1041 = vsub.f32 %v279, %v507
        %v1042 = vsub.f32 %v280, %v508
        %v1043 = vsub.f32 %v281, %v509
        %v1044 = vsub.f32 %v282, %v510
        %v1045 = vsub.f32 %v283, %v511
        %v1046 = vsub.f32 %v284, %v512
        %v1047 = vsub.f32 %v285, %v513
        %v1048 = vsub.f32 %v286, %v514
        %v1049 = vsub.f32 %v287, %v515
        %v1050 = vsub.f32 %v288, %v516
        %v1051 = vsub.f32 %v289, %v517
        %v1052 = vsub.f32 %v290, %v518
        %v1053 = vsub.f32 %v291, %v519
        %v1054 = vsub.f32 %v292, %v520
        %v1055 = vsub.f32 %v293, %v521
        %v1056 = vsub.f32 %v294, %v522
        %v1057 = vsub.f32 %v295, %v523
        %v1058 = vsub.f32 %v296, %v524
        %v1059 = vsub.f32 %v297, %v525
        %v1060 = vsub.f32 %v298, %v526
        %v1061 = vsub.f32 %v299, %v527
        %v1062 = vsub.f32 %v300, %v528
        %v1063 = vsub.f32 %v301, %v529
        %v1064 = vsub.f32 %v302, %v530
        %v1065 = vsub.f32 %v303, %v531
        %v1066 = vsub.f32 %v304, %v532
        %v1067 = vsub.f32 %v305, %v533
        %v1068 = vsub.f32 %v306, %v534
        %v1069 = vsub.f32 %v307, %v535
        %v1070 = vsub.f32 %v308, %v536
        %v1071 = vsub.f32 %v309, %v537
        %v1072 = vsub.f32 %v310, %v538
        %v1073 = vsub.f32 %v311, %v539
        %v1075 = vlaneseq
        %v1076 = vshrl.u32 %v1075, 7
        %v1077 = vsub.s32 0, %v1076
        %v1078 = vrot.slane %v1034, %v1077
        %v1080 = vmul.f32 %v1078, %v996
        %v1081 = vmul.f32 %v1078, %v997
        %v1082 = vmul.f32 %v1078, %v998
        %v1083 = vmul.f32 %v1078, %v999
        %v1084 = vmul.f32 %v1078, %v1000
        %v1085 = vmul.f32 %v1078, %v1001
        %v1086 = vmul.f32 %v1078, %v1002
        %v1087 = vmul.f32 %v1078, %v1003
        %v1088 = vmul.f32 %v1078, %v1004
        %v1089 = vmul.f32 %v1078, %v1005
        %v1090 = vmul.f32 %v1078, %v1006
        %v1091 = vmul.f32 %v1078, %v1007
        %v1092 = vmul.f32 %v1078, %v1008
        %v1093 = vmul.f32 %v1078, %v1009
        %v1094 = vmul.f32 %v1078, %v1010
        %v1095 = vmul.f32 %v1078, %v1011
        %v1096 = vmul.f32 %v1078, %v1012
        %v1097 = vmul.f32 %v1078, %v1013
        %v1098 = vmul.f32 %v1078, %v1014
        %v1099 = vmul.f32 %v1078, %v1015
        %v1100 = vmul.f32 %v1078, %v1016
        %v1101 = vmul.f32 %v1078, %v1017
        %v1102 = vmul.f32 %v1078, %v1018
        %v1103 = vmul.f32 %v1078, %v1019
        %v1104 = vmul.f32 %v1078, %v1020
        %v1105 = vmul.f32 %v1078, %v1021
        %v1106 = vmul.f32 %v1078, %v1022
        %v1107 = vmul.f32 %v1078, %v1023
        %v1108 = vmul.f32 %v1078, %v1024
        %v1109 = vmul.f32 %v1078, %v1025
        %v1110 = vmul.f32 %v1078, %v1026
        %v1111 = vmul.f32 %v1078, %v1027
        %v1112 = vmul.f32 %v1078, %v1028
        %v1113 = vmul.f32 %v1078, %v1029
        %v1114 = vmul.f32 %v1078, %v1030
        %v1115 = vmul.f32 %v1078, %v1031
        %v1116 = vmul.f32 %v1078, %v1032
        %v1117 = vmul.f32 %v1078, %v1033
        %v1118 = vmul.f32 %v1036, %v1080
        %v1119 = vmul.f32 %v1037, %v1081
        %v1120 = vmul.f32 %v1038, %v1082
        %v1121 = vmul.f32 %v1039, %v1083
        %v1122 = vmul.f32 %v1040, %v1084
        %v1123 = vmul.f32 %v1041, %v1085
        %v1124 = vmul.f32 %v1042, %v1086
        %v1125 = vmul.f32 %v1043, %v1087
        %v1126 = vmul.f32 %v1044, %v1088
        %v1127 = vmul.f32 %v1045, %v1089
        %v1128 = vmul.f32 %v1046, %v1090
        %v1129 = vmul.f32 %v1047, %v1091
        %v1130 = vmul.f32 %v1048, %v1092
        %v1131 = vmul.f32 %v1049, %v1093
        %v1132 = vmul.f32 %v1050, %v1094
        %v1133 = vmul.f32 %v1051, %v1095
        %v1134 = vmul.f32 %v1052, %v1096
        %v1135 = vmul.f32 %v1053, %v1097
        %v1136 = vmul.f32 %v1054, %v1098
        %v1137 = vmul.f32 %v1055, %v1099
        %v1138 = vmul.f32 %v1056, %v1100
        %v1139 = vmul.f32 %v1057, %v1101
        %v1140 = vmul.f32 %v1058, %v1102
        %v1141 = vmul.f32 %v1059, %v1103
        %v1142 = vmul.f32 %v1060, %v1104
        %v1143 = vmul.f32 %v1061, %v1105
        %v1144 = vmul.f32 %v1062, %v1106
        %v1145 = vmul.f32 %v1063, %v1107
        %v1146 = vmul.f32 %v1064, %v1108
        %v1147 = vmul.f32 %v1065, %v1109
        %v1148 = vmul.f32 %v1066, %v1110
        %v1149 = vmul.f32 %v1067, %v1111
        %v1150 = vmul.f32 %v1068, %v1112
        %v1151 = vmul.f32 %v1069, %v1113
        %v1152 = vmul.f32 %v1070, %v1114
        %v1153 = vmul.f32 %v1071, %v1115
        %v1154 = vmul.f32 %v1072, %v1116
        %v1155 = vmul.f32 %v1073, %v1117
        %v1157 = vlaneseq
        %v1158 = vshrl.u32 %v1157, 7
        %v1159 = vsub.s32 0, %v1158
        %v1160 = vrot.slane %v1035, %v1159
        %v1162 = vadd.f32 %v1118, %v1160
        %v1163 = vadd.f32 %v1119, %v1160
        %v1164 = vadd.f32 %v1120, %v1160
        %v1165 = vadd.f32 %v1121, %v1160
        %v1166 = vadd.f32 %v1122, %v1160
        %v1167 = vadd.f32 %v1123, %v1160
        %v1168 = vadd.f32 %v1124, %v1160
        %v1169 = vadd.f32 %v1125, %v1160
        %v1170 = vadd.f32 %v1126, %v1160
        %v1171 = vadd.f32 %v1127, %v1160
        %v1172 = vadd.f32 %v1128, %v1160
        %v1173 = vadd.f32 %v1129, %v1160
        %v1174 = vadd.f32 %v1130, %v1160
        %v1175 = vadd.f32 %v1131, %v1160
        %v1176 = vadd.f32 %v1132, %v1160
        %v1177 = vadd.f32 %v1133, %v1160
        %v1178 = vadd.f32 %v1134, %v1160
        %v1179 = vadd.f32 %v1135, %v1160
        %v1180 = vadd.f32 %v1136, %v1160
        %v1181 = vadd.f32 %v1137, %v1160
        %v1182 = vadd.f32 %v1138, %v1160
        %v1183 = vadd.f32 %v1139, %v1160
        %v1184 = vadd.f32 %v1140, %v1160
        %v1185 = vadd.f32 %v1141, %v1160
        %v1186 = vadd.f32 %v1142, %v1160
        %v1187 = vadd.f32 %v1143, %v1160
        %v1188 = vadd.f32 %v1144, %v1160
        %v1189 = vadd.f32 %v1145, %v1160
        %v1190 = vadd.f32 %v1146, %v1160
        %v1191 = vadd.f32 %v1147, %v1160
        %v1192 = vadd.f32 %v1148, %v1160
        %v1193 = vadd.f32 %v1149, %v1160
        %v1194 = vadd.f32 %v1150, %v1160
        %v1195 = vadd.f32 %v1151, %v1160
        %v1196 = vadd.f32 %v1152, %v1160
        %v1197 = vadd.f32 %v1153, %v1160
        %v1198 = vadd.f32 %v1154, %v1160
        %v1199 = vadd.f32 %v1155, %v1160
        %v1200 = vld [vmem:[#allocation5] sm:$0xff]
        %v1201 = vld [vmem:[#allocation5 + $0x8] sm:$0xff]
        %v1202 = vld [vmem:[#allocation5 + $0x10] sm:$0xff]
        %v1203 = vld [vmem:[#allocation5 + $0x18] sm:$0xff]
        %v1204 = vld [vmem:[#allocation5 + $0x20] sm:$0xff]
        %v1205 = vld [vmem:[#allocation5 + $0x28] sm:$0xff]
        %v1206 = vld [vmem:[#allocation5 + $0x30] sm:$0xff]
        %v1207 = vld [vmem:[#allocation5 + $0x38] sm:$0xff]
        %v1208 = vld [vmem:[#allocation5 + $0x40] sm:$0xff]
        %v1209 = vld [vmem:[#allocation5 + $0x48] sm:$0xff]
        %v1210 = vld [vmem:[#allocation5 + $0x50] sm:$0xff]
        %v1211 = vld [vmem:[#allocation5 + $0x58] sm:$0xff]
        %v1212 = vld [vmem:[#allocation5 + $0x60] sm:$0xff]
        %v1213 = vld [vmem:[#allocation5 + $0x68] sm:$0xff]
        %v1214 = vld [vmem:[#allocation5 + $0x70] sm:$0xff]
        %v1215 = vld [vmem:[#allocation5 + $0x78] sm:$0xff]
        %v1216 = vld [vmem:[%s4] sm:$0x1]
        %v1218 = vlaneseq
        %v1219 = vshrl.u32 %v1218, 7
        %v1220 = vsub.s32 0, %v1219
        %v1221 = vrot.slane %v1216, %v1220
        %1223 = vmatprep.subr.mxu0 0.0
        %1224 = vmatpush1.msra.mxu0 %v1200
        %1225 = vmatprep.subr.mxu0 0.0
        %1226 = vmatpush1.msra.mxu0 %v1201
        %1227 = vmatprep.subr.mxu0 0.0
        %1228 = vmatpush1.msra.mxu0 %v1202
        %1229 = vmatprep.subr.mxu0 0.0
        %1230 = vmatpush1.msra.mxu0 %v1203
        %1231 = vmatprep.subr.mxu0 0.0
        %1232 = vmatpush1.msra.mxu0 %v1204
        %1233 = vmatprep.subr.mxu0 0.0
        %1234 = vmatpush1.msra.mxu0 %v1205
        %1235 = vmatprep.subr.mxu0 0.0
        %1236 = vmatpush1.msra.mxu0 %v1206
        %1237 = vmatprep.subr.mxu0 0.0
        %1238 = vmatpush1.msra.mxu0 %v1207
        %1239 = vmatprep.subr.mxu0 0.0
        %1240 = vmatpush1.msra.mxu0 %v1208
        %1241 = vmatprep.subr.mxu0 0.0
        %1242 = vmatpush1.msra.mxu0 %v1209
        %1243 = vmatprep.subr.mxu0 0.0
        %1244 = vmatpush1.msra.mxu0 %v1210
        %1245 = vmatprep.subr.mxu0 0.0
        %1246 = vmatpush1.msra.mxu0 %v1211
        %1247 = vmatprep.subr.mxu0 0.0
        %1248 = vmatpush1.msra.mxu0 %v1212
        %1249 = vmatprep.subr.mxu0 0.0
        %1250 = vmatpush1.msra.mxu0 %v1213
        %1251 = vmatprep.subr.mxu0 0.0
        %1252 = vmatpush1.msra.mxu0 %v1214
        %1253 = vmatprep.subr.mxu0 0.0
        %1254 = vmatpush1.msra.mxu0 %v1215
        %1255 = vmatprep.subr.mxu0 0.0
        %1256 = vmatpush1.msra.mxu0 0.0
        %1257 = vmatprep.subr.mxu0 0.0
        %1258 = vmatpush1.msra.mxu0 0.0
        %1259 = vmatprep.subr.mxu0 0.0
        %1260 = vmatpush1.msra.mxu0 0.0
        %1261 = vmatprep.subr.mxu0 0.0
        %1262 = vmatpush1.msra.mxu0 0.0
        %1263 = vmatprep.subr.mxu0 0.0
        %1264 = vmatpush1.msra.mxu0 0.0
        %1265 = vmatprep.subr.mxu0 0.0
        %1266 = vmatpush1.msra.mxu0 0.0
        %1267 = vmatprep.subr.mxu0 0.0
        %1268 = vmatpush1.msra.mxu0 0.0
        %1269 = vmatprep.subr.mxu0 0.0
        %1270 = vmatpush1.msra.mxu0 0.0
        %1271 = vmatprep.subr.mxu0 0.0
        %1272 = vmatpush1.msra.mxu0 0.0
        %1273 = vmatprep.subr.mxu0 0.0
        %1274 = vmatpush1.msra.mxu0 0.0
        %1275 = vmatprep.subr.mxu0 0.0
        %1276 = vmatpush1.msra.mxu0 0.0
        %1277 = vmatprep.subr.mxu0 0.0
        %1278 = vmatpush1.msra.mxu0 0.0
        %1279 = vmatprep.subr.mxu0 0.0
        %1280 = vmatpush1.msra.mxu0 0.0
        %1281 = vmatprep.subr.mxu0 0.0
        %1282 = vmatpush1.msra.mxu0 0.0
        %1283 = vmatprep.subr.mxu0 0.0
        %1284 = vmatpush1.msra.mxu0 0.0
        %1285 = vmatprep.subr.mxu0 0.0
        %1286 = vmatpush1.msra.mxu0 0.0
        %1287 = vmatprep.mubr.f32.mxu0 0.0
        %1288 = vmatmul.mubr.f32.gmra.mrb[0].mxu0 %v1162
        %v1289 = vpop.f32.mrb[0].mxu0
        %v1290 = vadd.f32 %v1221, %v1289
        %v1291 = vpop.f32.mrb[0].mxu0
        %1292 = vmatprep.mubr.f32.mxu0 0.0
        %1293 = vmatmul.mubr.f32.gmra.mrb[0].mxu0 %v1163
        %v1294 = vpop.f32.mrb[0].mxu0
        %v1295 = vadd.f32 %v1221, %v1294
        %v1296 = vpop.f32.mrb[0].mxu0
        %1297 = vmatprep.mubr.f32.mxu0 0.0
        %1298 = vmatmul.mubr.f32.gmra.mrb[0].mxu0 %v1164
        %v1299 = vpop.f32.mrb[0].mxu0
        %v1300 = vadd.f32 %v1221, %v1299
        %v1301 = vpop.f32.mrb[0].mxu0
        %1302 = vmatprep.mubr.f32.mxu0 0.0
        %1303 = vmatmul.mubr.f32.gmra.mrb[0].mxu0 %v1165
        %v1304 = vpop.f32.mrb[0].mxu0
        %v1305 = vadd.f32 %v1221, %v1304
        %v1306 = vpop.f32.mrb[0].mxu0
        %1307 = vmatprep.mubr.f32.mxu0 0.0
        %1308 = vmatmul.mubr.f32.gmra.mrb[0].mxu0 %v1166
        %v1309 = vpop.f32.mrb[0].mxu0
        %v1310 = vadd.f32 %v1221, %v1309
        %v1311 = vpop.f32.mrb[0].mxu0
        %1312 = vmatprep.mubr.f32.mxu0 0.0
        %1313 = vmatmul.mubr.f32.gmra.mrb[0].mxu0 %v1167
        %v1314 = vpop.f32.mrb[0].mxu0
        %v1315 = vadd.f32 %v1221, %v1314
        %v1316 = vpop.f32.mrb[0].mxu0
        %1317 = vmatprep.mubr.f32.mxu0 0.0
        %1318 = vmatmul.mubr.f32.gmra.mrb[0].mxu0 %v1168
        %v1319 = vpop.f32.mrb[0].mxu0
        %v1320 = vadd.f32 %v1221, %v1319
        %v1321 = vpop.f32.mrb[0].mxu0
        %1322 = vmatprep.mubr.f32.mxu0 0.0
        %1323 = vmatmul.mubr.f32.gmra.mrb[0].mxu0 %v1169
        %v1324 = vpop.f32.mrb[0].mxu0
        %v1325 = vadd.f32 %v1221, %v1324
        %v1326 = vpop.f32.mrb[0].mxu0
        %1327 = vmatprep.mubr.f32.mxu0 0.0
        %1328 = vmatmul.mubr.f32.gmra.mrb[0].mxu0 %v1170
        %v1329 = vpop.f32.mrb[0].mxu0
        %v1330 = vadd.f32 %v1221, %v1329
        %v1331 = vpop.f32.mrb[0].mxu0
        %1332 = vmatprep.mubr.f32.mxu0 0.0
        %1333 = vmatmul.mubr.f32.gmra.mrb[0].mxu0 %v1171
        %v1334 = vpop.f32.mrb[0].mxu0
        %v1335 = vadd.f32 %v1221, %v1334
        %v1336 = vpop.f32.mrb[0].mxu0
        %1337 = vmatprep.mubr.f32.mxu0 0.0
        %1338 = vmatmul.mubr.f32.gmra.mrb[0].mxu0 %v1172
        %v1339 = vpop.f32.mrb[0].mxu0
        %v1340 = vadd.f32 %v1221, %v1339
        %v1341 = vpop.f32.mrb[0].mxu0
        %1342 = vmatprep.mubr.f32.mxu0 0.0
        %1343 = vmatmul.mubr.f32.gmra.mrb[0].mxu0 %v1173
        %v1344 = vpop.f32.mrb[0].mxu0
        %v1345 = vadd.f32 %v1221, %v1344
        %v1346 = vpop.f32.mrb[0].mxu0
        %1347 = vmatprep.mubr.f32.mxu0 0.0
        %1348 = vmatmul.mubr.f32.gmra.mrb[0].mxu0 %v1174
        %v1349 = vpop.f32.mrb[0].mxu0
        %v1350 = vadd.f32 %v1221, %v1349
        %v1351 = vpop.f32.mrb[0].mxu0
        %1352 = vmatprep.mubr.f32.mxu0 0.0
        %1353 = vmatmul.mubr.f32.gmra.mrb[0].mxu0 %v1175
        %v1354 = vpop.f32.mrb[0].mxu0
        %v1355 = vadd.f32 %v1221, %v1354
        %v1356 = vpop.f32.mrb[0].mxu0
        %1357 = vmatprep.mubr.f32.mxu0 0.0
        %1358 = vmatmul.mubr.f32.gmra.mrb[0].mxu0 %v1176
        %v1359 = vpop.f32.mrb[0].mxu0
        %v1360 = vadd.f32 %v1221, %v1359
        %v1361 = vpop.f32.mrb[0].mxu0
        %1362 = vmatprep.mubr.f32.mxu0 0.0
        %1363 = vmatmul.mubr.f32.gmra.mrb[0].mxu0 %v1177
        %v1364 = vpop.f32.mrb[0].mxu0
        %v1365 = vadd.f32 %v1221, %v1364
        %v1366 = vpop.f32.mrb[0].mxu0
        %1367 = vmatprep.mubr.f32.mxu0 0.0
        %1368 = vmatmul.mubr.f32.gmra.mrb[0].mxu0 %v1178
        %v1369 = vpop.f32.mrb[0].mxu0
        %v1370 = vadd.f32 %v1221, %v1369
        %v1371 = vpop.f32.mrb[0].mxu0
        %1372 = vmatprep.mubr.f32.mxu0 0.0
        %1373 = vmatmul.mubr.f32.gmra.mrb[0].mxu0 %v1179
        %v1374 = vpop.f32.mrb[0].mxu0
        %v1375 = vadd.f32 %v1221, %v1374
        %v1376 = vpop.f32.mrb[0].mxu0
        %1377 = vmatprep.mubr.f32.mxu0 0.0
        %1378 = vmatmul.mubr.f32.gmra.mrb[0].mxu0 %v1180
        %v1379 = vpop.f32.mrb[0].mxu0
        %v1380 = vadd.f32 %v1221, %v1379
        %v1381 = vpop.f32.mrb[0].mxu0
        %1382 = vmatprep.mubr.f32.mxu0 0.0
        %1383 = vmatmul.mubr.f32.gmra.mrb[0].mxu0 %v1181
        %v1384 = vpop.f32.mrb[0].mxu0
        %v1385 = vadd.f32 %v1221, %v1384
        %v1386 = vpop.f32.mrb[0].mxu0
        %1387 = vmatprep.mubr.f32.mxu0 0.0
        %1388 = vmatmul.mubr.f32.gmra.mrb[0].mxu0 %v1182
        %v1389 = vpop.f32.mrb[0].mxu0
        %v1390 = vadd.f32 %v1221, %v1389
        %v1391 = vpop.f32.mrb[0].mxu0
        %1392 = vmatprep.mubr.f32.mxu0 0.0
        %1393 = vmatmul.mubr.f32.gmra.mrb[0].mxu0 %v1183
        %v1394 = vpop.f32.mrb[0].mxu0
        %v1395 = vadd.f32 %v1221, %v1394
        %v1396 = vpop.f32.mrb[0].mxu0
        %1397 = vmatprep.mubr.f32.mxu0 0.0
        %1398 = vmatmul.mubr.f32.gmra.mrb[0].mxu0 %v1184
        %v1399 = vpop.f32.mrb[0].mxu0
        %v1400 = vadd.f32 %v1221, %v1399
        %v1401 = vpop.f32.mrb[0].mxu0
        %1402 = vmatprep.mubr.f32.mxu0 0.0
        %1403 = vmatmul.mubr.f32.gmra.mrb[0].mxu0 %v1185
        %v1404 = vpop.f32.mrb[0].mxu0
        %v1405 = vadd.f32 %v1221, %v1404
        %v1406 = vpop.f32.mrb[0].mxu0
        %1407 = vmatprep.mubr.f32.mxu0 0.0
        %1408 = vmatmul.mubr.f32.gmra.mrb[0].mxu0 %v1186
        %v1409 = vpop.f32.mrb[0].mxu0
        %v1410 = vadd.f32 %v1221, %v1409
        %v1411 = vpop.f32.mrb[0].mxu0
        %1412 = vmatprep.mubr.f32.mxu0 0.0
        %1413 = vmatmul.mubr.f32.gmra.mrb[0].mxu0 %v1187
        %v1414 = vpop.f32.mrb[0].mxu0
        %v1415 = vadd.f32 %v1221, %v1414
        %v1416 = vpop.f32.mrb[0].mxu0
        %1417 = vmatprep.mubr.f32.mxu0 0.0
        %1418 = vmatmul.mubr.f32.gmra.mrb[0].mxu0 %v1188
        %v1419 = vpop.f32.mrb[0].mxu0
        %v1420 = vadd.f32 %v1221, %v1419
        %v1421 = vpop.f32.mrb[0].mxu0
        %1422 = vmatprep.mubr.f32.mxu0 0.0
        %1423 = vmatmul.mubr.f32.gmra.mrb[0].mxu0 %v1189
        %v1424 = vpop.f32.mrb[0].mxu0
        %v1425 = vadd.f32 %v1221, %v1424
        %v1426 = vpop.f32.mrb[0].mxu0
        %1427 = vmatprep.mubr.f32.mxu0 0.0
        %1428 = vmatmul.mubr.f32.gmra.mrb[0].mxu0 %v1190
        %v1429 = vpop.f32.mrb[0].mxu0
        %v1430 = vadd.f32 %v1221, %v1429
        %v1431 = vpop.f32.mrb[0].mxu0
        %1432 = vmatprep.mubr.f32.mxu0 0.0
        %1433 = vmatmul.mubr.f32.gmra.mrb[0].mxu0 %v1191
        %v1434 = vpop.f32.mrb[0].mxu0
        %v1435 = vadd.f32 %v1221, %v1434
        %v1436 = vpop.f32.mrb[0].mxu0
        %1437 = vmatprep.mubr.f32.mxu0 0.0
        %1438 = vmatmul.mubr.f32.gmra.mrb[0].mxu0 %v1192
        %v1439 = vpop.f32.mrb[0].mxu0
        %v1440 = vadd.f32 %v1221, %v1439
        %v1441 = vpop.f32.mrb[0].mxu0
        %1442 = vmatprep.mubr.f32.mxu0 0.0
        %1443 = vmatmul.mubr.f32.gmra.mrb[0].mxu0 %v1193
        %v1444 = vpop.f32.mrb[0].mxu0
        %v1445 = vadd.f32 %v1221, %v1444
        %v1446 = vpop.f32.mrb[0].mxu0
        %1447 = vmatprep.mubr.f32.mxu0 0.0
        %1448 = vmatmul.mubr.f32.gmra.mrb[0].mxu0 %v1194
        %v1449 = vpop.f32.mrb[0].mxu0
        %v1450 = vadd.f32 %v1221, %v1449
        %v1451 = vpop.f32.mrb[0].mxu0
        %1452 = vmatprep.mubr.f32.mxu0 0.0
        %1453 = vmatmul.mubr.f32.gmra.mrb[0].mxu0 %v1195
        %v1454 = vpop.f32.mrb[0].mxu0
        %v1455 = vadd.f32 %v1221, %v1454
        %v1456 = vpop.f32.mrb[0].mxu0
        %1457 = vmatprep.mubr.f32.mxu0 0.0
        %1458 = vmatmul.mubr.f32.gmra.mrb[0].mxu0 %v1196
        %v1459 = vpop.f32.mrb[0].mxu0
        %v1460 = vadd.f32 %v1221, %v1459
        %v1461 = vpop.f32.mrb[0].mxu0
        %1462 = vmatprep.mubr.f32.mxu0 0.0
        %1463 = vmatmul.mubr.f32.gmra.mrb[0].mxu0 %v1197
        %v1464 = vpop.f32.mrb[0].mxu0
        %v1465 = vadd.f32 %v1221, %v1464
        %v1466 = vpop.f32.mrb[0].mxu0
        %1467 = vmatprep.mubr.f32.mxu0 0.0
        %1468 = vmatmul.mubr.f32.gmra.mrb[0].mxu0 %v1198
        %v1469 = vpop.f32.mrb[0].mxu0
        %v1470 = vadd.f32 %v1221, %v1469
        %v1471 = vpop.f32.mrb[0].mxu0
        %1472 = vmatprep.mubr.f32.mxu0 0.0
        %1473 = vmatmul.mubr.f32.gmra.mrb[0].mxu0 %v1199
        %v1474 = vpop.f32.mrb[0].mxu0
        %v1475 = vadd.f32 %v1221, %v1474
        %v1476 = vpop.f32.mrb[0].mxu0
        %1477 = vdwg.mxu0
        %v1478 = vadd.f32 %v274, %v1290
        %v1479 = vadd.f32 %v275, %v1295
        %v1480 = vadd.f32 %v276, %v1300
        %v1481 = vadd.f32 %v277, %v1305
        %v1482 = vadd.f32 %v278, %v1310
        %v1483 = vadd.f32 %v279, %v1315
        %v1484 = vadd.f32 %v280, %v1320
        %v1485 = vadd.f32 %v281, %v1325
        %v1486 = vadd.f32 %v282, %v1330
        %v1487 = vadd.f32 %v283, %v1335
        %v1488 = vadd.f32 %v284, %v1340
        %v1489 = vadd.f32 %v285, %v1345
        %v1490 = vadd.f32 %v286, %v1350
        %v1491 = vadd.f32 %v287, %v1355
        %v1492 = vadd.f32 %v288, %v1360
        %v1493 = vadd.f32 %v289, %v1365
        %v1494 = vadd.f32 %v290, %v1370
        %v1495 = vadd.f32 %v291, %v1375
        %v1496 = vadd.f32 %v292, %v1380
        %v1497 = vadd.f32 %v293, %v1385
        %v1498 = vadd.f32 %v294, %v1390
        %v1499 = vadd.f32 %v295, %v1395
        %v1500 = vadd.f32 %v296, %v1400
        %v1501 = vadd.f32 %v297, %v1405
        %v1502 = vadd.f32 %v298, %v1410
        %v1503 = vadd.f32 %v299, %v1415
        %v1504 = vadd.f32 %v300, %v1420
        %v1505 = vadd.f32 %v301, %v1425
        %v1506 = vadd.f32 %v302, %v1430
        %v1507 = vadd.f32 %v303, %v1435
        %v1508 = vadd.f32 %v304, %v1440
        %v1509 = vadd.f32 %v305, %v1445
        %v1510 = vadd.f32 %v306, %v1450
        %v1511 = vadd.f32 %v307, %v1455
        %v1512 = vadd.f32 %v308, %v1460
        %v1513 = vadd.f32 %v309, %v1465
        %v1514 = vadd.f32 %v310, %v1470
        %v1515 = vadd.f32 %v311, %v1475
        %1516 = vst [vmem:[%s263] sm:$0xff] %v1478
        %1517 = vst [vmem:[%s263 + $0x8] sm:$0xff] %v1479
        %1518 = vst [vmem:[%s263 + $0x10] sm:$0xff] %v1480
        %1519 = vst [vmem:[%s263 + $0x18] sm:$0xff] %v1481
        %1520 = vst [vmem:[%s263 + $0x20] sm:$0xff] %v1482
        %1521 = vst [vmem:[%s263 + $0x28] sm:$0xff] %v1483
        %1522 = vst [vmem:[%s263 + $0x30] sm:$0xff] %v1484
        %1523 = vst [vmem:[%s263 + $0x38] sm:$0xff] %v1485
        %1524 = vst [vmem:[%s263 + $0x40] sm:$0xff] %v1486
        %1525 = vst [vmem:[%s263 + $0x48] sm:$0xff] %v1487
        %1526 = vst [vmem:[%s263 + $0x50] sm:$0xff] %v1488
        %1527 = vst [vmem:[%s263 + $0x58] sm:$0xff] %v1489
        %1528 = vst [vmem:[%s263 + $0x60] sm:$0xff] %v1490
        %1529 = vst [vmem:[%s263 + $0x68] sm:$0xff] %v1491
        %1530 = vst [vmem:[%s263 + $0x70] sm:$0xff] %v1492
        %1531 = vst [vmem:[%s263 + $0x78] sm:$0xff] %v1493
        %1532 = vst [vmem:[%s263 + $0x80] sm:$0xff] %v1494
        %1533 = vst [vmem:[%s263 + $0x88] sm:$0xff] %v1495
        %1534 = vst [vmem:[%s263 + $0x90] sm:$0xff] %v1496
        %1535 = vst [vmem:[%s263 + $0x98] sm:$0xff] %v1497
        %1536 = vst [vmem:[%s263 + $0xa0] sm:$0xff] %v1498
        %1537 = vst [vmem:[%s263 + $0xa8] sm:$0xff] %v1499
        %1538 = vst [vmem:[%s263 + $0xb0] sm:$0xff] %v1500
        %1539 = vst [vmem:[%s263 + $0xb8] sm:$0xff] %v1501
        %1540 = vst [vmem:[%s263 + $0xc0] sm:$0xff] %v1502
        %1541 = vst [vmem:[%s263 + $0xc8] sm:$0xff] %v1503
        %1542 = vst [vmem:[%s263 + $0xd0] sm:$0xff] %v1504
        %1543 = vst [vmem:[%s263 + $0xd8] sm:$0xff] %v1505
        %1544 = vst [vmem:[%s263 + $0xe0] sm:$0xff] %v1506
        %1545 = vst [vmem:[%s263 + $0xe8] sm:$0xff] %v1507
        %1546 = vst [vmem:[%s263 + $0xf0] sm:$0xff] %v1508
        %1547 = vst [vmem:[%s263 + $0xf8] sm:$0xff] %v1509
        %1548 = vst [vmem:[%s263 + $0x100] sm:$0xff] %v1510
        %1549 = vst [vmem:[%s263 + $0x108] sm:$0xff] %v1511
        %1550 = vst [vmem:[%s263 + $0x110] sm:$0xff] %v1512
        %1551 = vst [vmem:[%s263 + $0x118] sm:$0xff] %v1513
        %1552 = vst [vmem:[%s263 + $0x120] sm:$0xff] %v1514
        %1553 = vst [vmem:[%s263 + $0x128] sm:$0xff] %v1515
        %s1554 = sand.u32 %s141, 1
        %s1555 = scalar_lea.sflag [#allocation4], %s1554
        %s1556 = sand.u32 %s141, 1
        %s1557 = smul.addr %s1556, 304
        %s1558 = scalar_lea.vmem [#allocation7], %s1557
        // Predicated region
        $region49: #{tpu_custom_call.1} parent=39 // pred_check
          %p1559 = pneg %p151
        $region50: #{tpu_custom_call.1} parent=39 // pred_check_branch
          %1561 = sbr.rel (%p1559) target = $region52
        $region51: #{tpu_custom_call.1} parent=39 // pred_region
          %s1562 = smul.u32 38, %s23
          %s1563 = ssub.s32 75, %s1562
          %p1564 = scmp.lt.s32.totalorder %s1563, 38
          %s1565 = scalar_select %p1564, %s1563, 38
          %s1566 = smul.u32 128, %s1565
          %s1568 = ssub.s32 4864, %s1566
          %1569 = vsyncadd %s1555, %s1568
          %p1570 = scmp.ne.s32.totalorder 0, %s1566
          %s1571 = smul.addr %s1562, 128
          %s1572 = scalar_lea.hbm %s5, %s1571
          %s1573 = smul.u32 8, %s1565
          %s1574 = sshll.u32 %s1558, 4
          %s1575 = int_to_ptr.vmem [resolvable:$true] %s1574
          %s1576 = sshll.u32 %s1573, 4
          %1580 = dma.vmem_to_hbm [thread:$0]  (%p1570), %s1575, %s1576, %s1572, %s1555, 128, 128, 8
        $region52: #{tpu_custom_call.1} parent=39 // pred_fallthru
          _
      $region40: #{tpu_custom_call.1} parent=5 // pred_fallthru
        _
      %p1581 = scmp.le.s32.totalorder 2, %s18
      // Predicated region
      $region53: #{tpu_custom_call.1} parent=5 // pred_check
        %p1582 = pneg %p1581
      $region54: #{tpu_custom_call.1} parent=5 // pred_check_branch
        %1584 = sbr.rel (%p1582) target = $region56
      $region55: #{tpu_custom_call.1} parent=5 // pred_region
        %s1585 = ssub.s32 %s18, 2
        // Predicated region
        $region57: #{tpu_custom_call.1} parent=55 // pred_check
          %p1586 = pneg %p157
        $region58: #{tpu_custom_call.1} parent=55 // pred_check_branch
          %1588 = sbr.rel (%p1586) target = $region60
        $region59: #{tpu_custom_call.1} parent=55 // pred_region
          %s1589 = sand.u32 %s142, 1
          %s1590 = scalar_lea.sflag [#allocation4], %s1589
          %s1591 = sand.u32 %s142, 1
          %s1592 = smul.addr %s1591, 304
          %s1593 = scalar_lea.vmem [#allocation7], %s1592
          %1594 = dma.done %s1590, 4864
        $region60: #{tpu_custom_call.1} parent=55 // pred_fallthru
          _
      $region56: #{tpu_custom_call.1} parent=5 // pred_fallthru
        _
    $region6: #{tpu_custom_call.1} parent=1 // loop_footer
      %s22 = sadd.s32 1, %s18
    $region7: #{tpu_custom_call.1} parent=1 // loop_footer_branch
      %17 = sbr.rel target = $region3
    $region8: #{tpu_custom_call.1} parent=1 // loop_exit
      _
    %1595 = vsyncpa [#allocation3], 1
    %s1596 = scalar_lea.sflag [#allocation3], 1
    %1597 = vsyncpa %s1596, 1
    %1598 = vsyncpa [#allocation6], 1
    %1599 = vsyncpa [#allocation4], 1
    %s1600 = scalar_lea.sflag [#allocation4], 1
    %1601 = vsyncpa %s1600, 1

</llo_original>
